<compile_context>
chip_gen: v5e
topology: v5e:2x2
jax: 0.10.0
libtpu: 0.0.40
codegen_flags: <defaults>
</compile_context>

<pallas_src>
import functools

import jax
import jax.numpy as jnp
import numpy as np
from jax.experimental import pallas as pl
from jax.experimental.pallas import tpu as pltpu


def _attention_kernel(x_ref, wq_ref, wk_ref, wv_ref, wo_ref, bo_ref,
                      out_ref, k_scr, v_scr, *, num_heads, q_tile):
    # x_ref:  (1, N, C)   full sequence of the current batch element
    # wq/wk/wv_ref: (H, C, hd)  per-head projection weights (scale folded into wq)
    # wo_ref: (H, hd, C)  per-head slices of the output projection
    # bo_ref: (1, C)      output-projection bias (f32)
    # out_ref: (1, tq, C)
    # k_scr/v_scr: (H, N, hd) VMEM caches, persistent across query tiles
    H = num_heads
    tq = q_tile
    qi = pl.program_id(1)
    dt = x_ref.dtype

    # ---- K / V: computed once per batch element (first query tile) and cached in
    #      VMEM with heads on the leading (batch) axis -> batched-over-heads matmuls.
    @pl.when(qi == 0)
    def _compute_kv():
        x_full = x_ref[0]                                             # (N, C)
        xb = jnp.broadcast_to(x_full[None, :, :], (H,) + x_full.shape)
        k_scr[...] = jnp.einsum("hnc,hcd->hnd", xb, wk_ref[...],
                                preferred_element_type=jnp.float32).astype(dt)
        v_scr[...] = jnp.einsum("hnc,hcd->hnd", xb, wv_ref[...],
                                preferred_element_type=jnp.float32).astype(dt)

    # ---- Q for this query tile, sliced from the resident full-sequence block.
    q_start = pl.multiple_of(qi * tq, tq)
    xq = x_ref[0, pl.ds(q_start, tq), :]                              # (tq, C)
    xqb = jnp.broadcast_to(xq[None, :, :], (H, tq, xq.shape[-1]))
    q = jnp.einsum("hqc,hcd->hqd", xqb, wq_ref[...],
                   preferred_element_type=jnp.float32).astype(dt)     # (H, tq, hd)

    # ---- Batched-over-heads scaled dot-product attention; softmax math in f32.
    s = jnp.einsum("hqd,hkd->hqk", q, k_scr[...],
                   preferred_element_type=jnp.float32)                # (H, tq, N)
    m = jnp.max(s, axis=-1, keepdims=True)
    p = jnp.exp(s - m)
    l = jnp.sum(p, axis=-1, keepdims=True)
    # attn_drop is identity (p = 0.0)

    # PV matmul on unnormalized probabilities; normalize afterwards on the much
    # smaller (H, tq, hd) tensor with the EUP approximate reciprocal.
    ctx = jnp.einsum("hqk,hkd->hqd", p.astype(dt), v_scr[...],
                     preferred_element_type=jnp.float32)              # (H, tq, hd) f32
    ctx = (ctx * pl.reciprocal(l, approx=True)).astype(dt)

    # ---- Output projection folded per head, accumulated over heads (no concat).
    out = jnp.einsum("hqd,hdc->hqc", ctx, wo_ref[...],
                     preferred_element_type=jnp.float32)              # (H, tq, C)
    out = jnp.sum(out, axis=0) + bo_ref[...]                          # (tq, C), f32
    # proj_drop is identity (p = 0.0)
    out_ref[0] = out.astype(out_ref.dtype)


def attention_pallas(x, w_qkv, w_proj, b_proj, *, num_heads, q_block=128):
    """x: (B, N, C). Weights follow PyTorch nn.Linear convention:
       w_qkv: (3C, C) (qkv_bias=False), w_proj: (C, C), b_proj: (C,)."""
    B, N, C = x.shape
    H = num_heads
    assert C % H == 0
    hd = C // H
    scale = hd ** (-0.5)

    # Query tiling: use q_block when it evenly divides N, otherwise fall back to a
    # single full-sequence query tile (MAE sequence lengths are short).
    if q_block < N and N % q_block == 0:
        tq = q_block
    else:
        tq = N
    nq = N // tq

    # ---- one-time weight preparation (plain JAX glue): heads -> leading axis.
    w_qkv = jnp.asarray(w_qkv)                         # (3C, C)  PyTorch (out, in)
    w_split = w_qkv.reshape(3, H, hd, C)               # (3, H, hd, C)
    wq = jnp.transpose(w_split[0], (0, 2, 1)) * scale  # (H, C, hd), scale folded in
    wk = jnp.transpose(w_split[1], (0, 2, 1))          # (H, C, hd)
    wv = jnp.transpose(w_split[2], (0, 2, 1))          # (H, C, hd)
    wo = jnp.transpose(jnp.asarray(w_proj), (1, 0)).reshape(H, hd, C)  # (H, hd, C)
    bo = jnp.asarray(b_proj).reshape(1, C).astype(jnp.float32)

    # Keep matmul operands in the activation dtype (bf16-native path when x is bf16).
    wq = wq.astype(x.dtype)
    wk = wk.astype(x.dtype)
    wv = wv.astype(x.dtype)
    wo = wo.astype(x.dtype)

    kernel = functools.partial(_attention_kernel, num_heads=H, q_tile=tq)

    return pl.pallas_call(
        kernel,
        out_shape=jax.ShapeDtypeStruct((B, N, C), x.dtype),
        grid_spec=pltpu.PrefetchScalarGridSpec(
            num_scalar_prefetch=0,
            grid=(B, nq),
            in_specs=[
                pl.BlockSpec((1, N, C), lambda b, qi: (b, 0, 0)),    # full seq (Q/K/V)
                pl.BlockSpec((H, C, hd), lambda b, qi: (0, 0, 0)),   # Wq (scaled)
                pl.BlockSpec((H, C, hd), lambda b, qi: (0, 0, 0)),   # Wk
                pl.BlockSpec((H, C, hd), lambda b, qi: (0, 0, 0)),   # Wv
                pl.BlockSpec((H, hd, C), lambda b, qi: (0, 0, 0)),   # Wproj per head
                pl.BlockSpec((1, C), lambda b, qi: (0, 0)),          # proj bias
            ],
            out_specs=pl.BlockSpec((1, tq, C), lambda b, qi: (b, qi, 0)),
            scratch_shapes=[
                pltpu.VMEM((H, N, hd), x.dtype),   # K cache (heads leading)
                pltpu.VMEM((H, N, hd), x.dtype),   # V cache
            ],
        ),
        compiler_params=pltpu.CompilerParams(
            dimension_semantics=("parallel", "arbitrary"),
            vmem_limit_bytes=32 * 1024 * 1024,
        ),
    )(x, wq, wk, wv, wo, bo)


def attention_reference(x, w_qkv, w_proj, b_proj, *, num_heads):
    """Pure-JAX reference mirroring the PyTorch forward."""
    B, N, C = x.shape
    head_dim = C // num_heads
    scale = head_dim ** (-0.5)
    qkv = jnp.einsum("bnc,oc->bno", x, w_qkv)                       # (B, N, 3C)
    qkv = qkv.reshape(B, N, 3, num_heads, head_dim).transpose(2, 0, 3, 1, 4)
    q, k, v = qkv[0], qkv[1], qkv[2]                                # (B, H, N, hd)
    attn = jnp.einsum("bhnd,bhmd->bhnm", q, k) * scale
    attn = jax.nn.softmax(attn, axis=-1)
    out = jnp.einsum("bhnm,bhmd->bhnd", attn, v)
    out = out.transpose(0, 2, 1, 3).reshape(B, N, C)
    out = jnp.einsum("bnc,oc->bno", out, w_proj) + b_proj
    return out


if __name__ == "__main__":
    # Small shapes consistent with the module: dim=C=32, num_heads=8 (head_dim=4).
    B, N, C = 2, 8, 32
    num_heads = 8

    key = jax.random.PRNGKey(0)
    kx, kw1, kw2, kb2 = jax.random.split(key, 4)

    x = jax.random.normal(kx, (B, N, C), dtype=jnp.float32)
    w_qkv = jax.random.normal(kw1, (3 * C, C), dtype=jnp.float32) * 0.05   # Linear(dim, 3*dim, bias=False)
    w_proj = jax.random.normal(kw2, (C, C), dtype=jnp.float32) * 0.05      # Linear(dim, dim)
    b_proj = jax.random.normal(kb2, (C,), dtype=jnp.float32) * 0.05

    out = attention_pallas(x, w_qkv, w_proj, b_proj, num_heads=num_heads)
    out = jax.block_until_ready(out)
    ref = attention_reference(x, w_qkv, w_proj, b_proj, num_heads=num_heads)
    # Tolerance accounts for the EUP approximate reciprocal used in softmax normalize.
    np.testing.assert_allclose(np.asarray(out), np.asarray(ref), rtol=2e-3, atol=2e-3)

    # Also exercise the query-tiled path (nq > 1) with K/V cached across query tiles.
    x2 = jax.random.normal(jax.random.PRNGKey(1), (B, 16, C), dtype=jnp.float32)
    out2 = attention_pallas(x2, w_qkv, w_proj, b_proj, num_heads=num_heads, q_block=8)
    out2 = jax.block_until_ready(out2)
    ref2 = attention_reference(x2, w_qkv, w_proj, b_proj, num_heads=num_heads)
    np.testing.assert_allclose(np.asarray(out2), np.asarray(ref2), rtol=2e-3, atol=2e-3)

    print("KERNEL_OK")
</pallas_src>

<mosaic_0001>
module attributes {stable_mosaic.version = 11 : i64} {
  func.func @_attention_kernel(%arg0: i32, %arg1: i32, %arg2: memref<1x8x32xf32, #tpu.memory_space<vmem>>, %arg3: memref<8x32x4xf32, #tpu.memory_space<vmem>>, %arg4: memref<8x32x4xf32, #tpu.memory_space<vmem>>, %arg5: memref<8x32x4xf32, #tpu.memory_space<vmem>>, %arg6: memref<8x4x32xf32, #tpu.memory_space<vmem>>, %arg7: memref<1x32xf32, #tpu.memory_space<vmem>>, %arg8: memref<1x8x32xf32, #tpu.memory_space<vmem>>, %arg9: memref<8x8x4xf32, #tpu.memory_space<vmem>>, %arg10: memref<8x8x4xf32, #tpu.memory_space<vmem>>) attributes {dimension_semantics = [#tpu.dimension_semantics<parallel>, #tpu.dimension_semantics<arbitrary>], iteration_bounds = array<i64: 2, 1>, scalar_prefetch = 0 : i64, scratch_operands = 2 : i64, tpu.core_type = #tpu.core_type<tc>, window_params = [{transform_indices = @transform_0, window_bounds = array<i64: 1, 8, 32>}, {pipeline_mode = #tpu.pipeline_mode<synchronous>, transform_indices = @transform_1, window_bounds = array<i64: 8, 32, 4>}, {pipeline_mode = #tpu.pipeline_mode<synchronous>, transform_indices = @transform_2, window_bounds = array<i64: 8, 32, 4>}, {pipeline_mode = #tpu.pipeline_mode<synchronous>, transform_indices = @transform_3, window_bounds = array<i64: 8, 32, 4>}, {pipeline_mode = #tpu.pipeline_mode<synchronous>, transform_indices = @transform_4, window_bounds = array<i64: 8, 4, 32>}, {pipeline_mode = #tpu.pipeline_mode<synchronous>, transform_indices = @transform_5, window_bounds = array<i64: 1, 32>}, {transform_indices = @transform_6, window_bounds = array<i64: 1, 8, 32>}]} {
    %c0_i32 = arith.constant 0 : i32
    %0 = arith.cmpi eq, %arg1, %c0_i32 : i32
    %1 = arith.extui %0 : i1 to i32
    %c0_i32_0 = arith.constant 0 : i32
    %2 = arith.cmpi ne, %1, %c0_i32_0 : i32
    scf.if %2 {
      %c0_25 = arith.constant 0 : index
      %c0_26 = arith.constant 0 : index
      %c0_27 = arith.constant 0 : index
      %36 = vector.load %arg2[%c0_25, %c0_26, %c0_27] : memref<1x8x32xf32, #tpu.memory_space<vmem>>, vector<1x8x32xf32>
      %37 = vector.shape_cast %36 : vector<1x8x32xf32> to vector<8x32xf32>
      %38 = vector.shape_cast %37 : vector<8x32xf32> to vector<1x8x32xf32>
      %39 = vector.shape_cast %38 : vector<1x8x32xf32> to vector<1x8x32xf32>
      %40 = vector.broadcast %39 : vector<1x8x32xf32> to vector<8x8x32xf32>
      %c0_28 = arith.constant 0 : index
      %c0_29 = arith.constant 0 : index
      %c0_30 = arith.constant 0 : index
      %41 = vector.load %arg4[%c0_28, %c0_29, %c0_30] : memref<8x32x4xf32, #tpu.memory_space<vmem>>, vector<8x32x4xf32>
      "tpu.trace_start"() <{level = 10 : i32, message = "hnc,hcd->hnd"}> : () -> ()
      %cst_31 = arith.constant dense<0.000000e+00> : vector<8x8x4xf32>
      %42 = tpu.matmul %40, %41, %cst_31 {dimension_numbers = #tpu.dot_dimension_numbers<[2], [1], [1], [2], [0, 0, 0, 1, 1, 2], [0], [0]>} : vector<8x8x32xf32>, vector<8x32x4xf32>, vector<8x8x4xf32> -> vector<8x8x4xf32>
      "tpu.trace_stop"() : () -> ()
      %c0_32 = arith.constant 0 : index
      %c0_33 = arith.constant 0 : index
      %c0_34 = arith.constant 0 : index
      %43 = vector.load %arg9[%c0_32, %c0_33, %c0_34] : memref<8x8x4xf32, #tpu.memory_space<vmem>>, vector<8x8x4xf32>
      tpu.vector_store %arg9[%c0_32, %c0_33, %c0_34], %42 {strides = array<i32>} : memref<8x8x4xf32, #tpu.memory_space<vmem>>, vector<8x8x4xf32>,
      %c0_35 = arith.constant 0 : index
      %c0_36 = arith.constant 0 : index
      %c0_37 = arith.constant 0 : index
      %44 = vector.load %arg5[%c0_35, %c0_36, %c0_37] : memref<8x32x4xf32, #tpu.memory_space<vmem>>, vector<8x32x4xf32>
      "tpu.trace_start"() <{level = 10 : i32, message = "hnc,hcd->hnd"}> : () -> ()
      %cst_38 = arith.constant dense<0.000000e+00> : vector<8x8x4xf32>
      %45 = tpu.matmul %40, %44, %cst_38 {dimension_numbers = #tpu.dot_dimension_numbers<[2], [1], [1], [2], [0, 0, 0, 1, 1, 2], [0], [0]>} : vector<8x8x32xf32>, vector<8x32x4xf32>, vector<8x8x4xf32> -> vector<8x8x4xf32>
      "tpu.trace_stop"() : () -> ()
      %c0_39 = arith.constant 0 : index
      %c0_40 = arith.constant 0 : index
      %c0_41 = arith.constant 0 : index
      %46 = vector.load %arg10[%c0_39, %c0_40, %c0_41] : memref<8x8x4xf32, #tpu.memory_space<vmem>>, vector<8x8x4xf32>
      tpu.vector_store %arg10[%c0_39, %c0_40, %c0_41], %45 {strides = array<i32>} : memref<8x8x4xf32, #tpu.memory_space<vmem>>, vector<8x8x4xf32>,
    } else {
    }
    %c8_i32 = arith.constant 8 : i32
    %3 = arith.muli %arg1, %c8_i32 : i32
    %4 = tpu.assume_multiple %3, 8 : i32
    %c0 = arith.constant 0 : index
    %5 = arith.index_cast %4 : i32 to index
    %c0_1 = arith.constant 0 : index
    %6 = vector.load %arg2[%c0, %5, %c0_1] : memref<1x8x32xf32, #tpu.memory_space<vmem>>, vector<1x8x32xf32>
    %7 = vector.shape_cast %6 : vector<1x8x32xf32> to vector<8x32xf32>
    %8 = vector.shape_cast %7 : vector<8x32xf32> to vector<1x8x32xf32>
    %9 = vector.shape_cast %8 : vector<1x8x32xf32> to vector<1x8x32xf32>
    %10 = vector.broadcast %9 : vector<1x8x32xf32> to vector<8x8x32xf32>
    %c0_2 = arith.constant 0 : index
    %c0_3 = arith.constant 0 : index
    %c0_4 = arith.constant 0 : index
    %11 = vector.load %arg3[%c0_2, %c0_3, %c0_4] : memref<8x32x4xf32, #tpu.memory_space<vmem>>, vector<8x32x4xf32>
    "tpu.trace_start"() <{level = 10 : i32, message = "hqc,hcd->hqd"}> : () -> ()
    %cst = arith.constant dense<0.000000e+00> : vector<8x8x4xf32>
    %12 = tpu.matmul %10, %11, %cst {dimension_numbers = #tpu.dot_dimension_numbers<[2], [1], [1], [2], [0, 0, 0, 1, 1, 2], [0], [0]>} : vector<8x8x32xf32>, vector<8x32x4xf32>, vector<8x8x4xf32> -> vector<8x8x4xf32>
    "tpu.trace_stop"() : () -> ()
    %c0_5 = arith.constant 0 : index
    %c0_6 = arith.constant 0 : index
    %c0_7 = arith.constant 0 : index
    %13 = vector.load %arg9[%c0_5, %c0_6, %c0_7] : memref<8x8x4xf32, #tpu.memory_space<vmem>>, vector<8x8x4xf32>
    "tpu.trace_start"() <{level = 10 : i32, message = "hqd,hkd->hqk"}> : () -> ()
    %cst_8 = arith.constant dense<0.000000e+00> : vector<8x8x8xf32>
    %14 = tpu.matmul %12, %13, %cst_8 {dimension_numbers = #tpu.dot_dimension_numbers<[2], [2], [1], [1], [0, 0, 0, 1, 1, 1], [0], [0]>} : vector<8x8x4xf32>, vector<8x8x4xf32>, vector<8x8x8xf32> -> vector<8x8x8xf32>
    "tpu.trace_stop"() : () -> ()
    %cst_9 = arith.constant dense<0xFF800000> : vector<8x8xf32>
    %15 = vector.multi_reduction <maximumf>, %14, %cst_9 [2] : vector<8x8x8xf32> to vector<8x8xf32>
    %16 = vector.shape_cast %15 : vector<8x8xf32> to vector<8x8x1xf32>
    %17 = vector.broadcast %16 : vector<8x8x1xf32> to vector<8x8x8xf32>
    %18 = arith.subf %14, %17 : vector<8x8x8xf32>
    %19 = math.exp %18 : vector<8x8x8xf32>
    %cst_10 = arith.constant dense<0.000000e+00> : vector<8x8xf32>
    %20 = vector.multi_reduction <add>, %19, %cst_10 [2] : vector<8x8x8xf32> to vector<8x8xf32>
    %21 = vector.shape_cast %20 : vector<8x8xf32> to vector<8x8x1xf32>
    %c0_11 = arith.constant 0 : index
    %c0_12 = arith.constant 0 : index
    %c0_13 = arith.constant 0 : index
    %22 = vector.load %arg10[%c0_11, %c0_12, %c0_13] : memref<8x8x4xf32, #tpu.memory_space<vmem>>, vector<8x8x4xf32>
    "tpu.trace_start"() <{level = 10 : i32, message = "hqk,hkd->hqd"}> : () -> ()
    %cst_14 = arith.constant dense<0.000000e+00> : vector<8x8x4xf32>
    %23 = tpu.matmul %19, %22, %cst_14 {dimension_numbers = #tpu.dot_dimension_numbers<[2], [1], [1], [2], [0, 0, 0, 1, 1, 2], [0], [0]>} : vector<8x8x8xf32>, vector<8x8x4xf32>, vector<8x8x4xf32> -> vector<8x8x4xf32>
    "tpu.trace_stop"() : () -> ()
    %24 = tpu.reciprocal %21 {approx = true} : vector<8x8x1xf32> -> vector<8x8x1xf32>
    %25 = vector.broadcast %24 : vector<8x8x1xf32> to vector<8x8x4xf32>
    %26 = arith.mulf %23, %25 : vector<8x8x4xf32>
    %c0_15 = arith.constant 0 : index
    %c0_16 = arith.constant 0 : index
    %c0_17 = arith.constant 0 : index
    %27 = vector.load %arg6[%c0_15, %c0_16, %c0_17] : memref<8x4x32xf32, #tpu.memory_space<vmem>>, vector<8x4x32xf32>
    "tpu.trace_start"() <{level = 10 : i32, message = "hqd,hdc->hqc"}> : () -> ()
    %cst_18 = arith.constant dense<0.000000e+00> : vector<8x8x32xf32>
    %28 = tpu.matmul %26, %27, %cst_18 {dimension_numbers = #tpu.dot_dimension_numbers<[2], [1], [1], [2], [0, 0, 0, 1, 1, 2], [0], [0]>} : vector<8x8x4xf32>, vector<8x4x32xf32>, vector<8x8x32xf32> -> vector<8x8x32xf32>
    "tpu.trace_stop"() : () -> ()
    %cst_19 = arith.constant dense<0.000000e+00> : vector<8x32xf32>
    %29 = vector.multi_reduction <add>, %28, %cst_19 [0] : vector<8x8x32xf32> to vector<8x32xf32>
    %c0_20 = arith.constant 0 : index
    %c0_21 = arith.constant 0 : index
    %30 = vector.load %arg7[%c0_20, %c0_21] : memref<1x32xf32, #tpu.memory_space<vmem>>, vector<1x32xf32>
    %31 = vector.broadcast %30 : vector<1x32xf32> to vector<8x32xf32>
    %32 = arith.addf %29, %31 : vector<8x32xf32>
    %c0_22 = arith.constant 0 : index
    %c0_23 = arith.constant 0 : index
    %c0_24 = arith.constant 0 : index
    %33 = vector.load %arg8[%c0_22, %c0_23, %c0_24] : memref<1x8x32xf32, #tpu.memory_space<vmem>>, vector<1x8x32xf32>
    %34 = vector.shape_cast %33 : vector<1x8x32xf32> to vector<8x32xf32>
    %35 = vector.shape_cast %32 : vector<8x32xf32> to vector<1x8x32xf32>
    tpu.vector_store %arg8[%c0_22, %c0_23, %c0_24], %35 {strides = array<i32>} : memref<1x8x32xf32, #tpu.memory_space<vmem>>, vector<1x8x32xf32>,
    return
  }
  func.func @transform_0(%arg0: i32, %arg1: i32) -> (i32, i32, i32) {
    %c0_i32 = arith.constant 0 : i32
    %c0_i32_0 = arith.constant 0 : i32
    %c0_i32_1 = arith.constant 0 : i32
    return %arg0, %c0_i32, %c0_i32_0 : i32, i32, i32
  }
  func.func @transform_1(%arg0: i32, %arg1: i32) -> (i32, i32, i32) {
    %c0_i32 = arith.constant 0 : i32
    %c0_i32_0 = arith.constant 0 : i32
    %c0_i32_1 = arith.constant 0 : i32
    %c0_i32_2 = arith.constant 0 : i32
    return %c0_i32, %c0_i32_0, %c0_i32_1 : i32, i32, i32
  }
  func.func @transform_2(%arg0: i32, %arg1: i32) -> (i32, i32, i32) {
    %c0_i32 = arith.constant 0 : i32
    %c0_i32_0 = arith.constant 0 : i32
    %c0_i32_1 = arith.constant 0 : i32
    %c0_i32_2 = arith.constant 0 : i32
    return %c0_i32, %c0_i32_0, %c0_i32_1 : i32, i32, i32
  }
  func.func @transform_3(%arg0: i32, %arg1: i32) -> (i32, i32, i32) {
    %c0_i32 = arith.constant 0 : i32
    %c0_i32_0 = arith.constant 0 : i32
    %c0_i32_1 = arith.constant 0 : i32
    %c0_i32_2 = arith.constant 0 : i32
    return %c0_i32, %c0_i32_0, %c0_i32_1 : i32, i32, i32
  }
  func.func @transform_4(%arg0: i32, %arg1: i32) -> (i32, i32, i32) {
    %c0_i32 = arith.constant 0 : i32
    %c0_i32_0 = arith.constant 0 : i32
    %c0_i32_1 = arith.constant 0 : i32
    %c0_i32_2 = arith.constant 0 : i32
    return %c0_i32, %c0_i32_0, %c0_i32_1 : i32, i32, i32
  }
  func.func @transform_5(%arg0: i32, %arg1: i32) -> (i32, i32) {
    %c0_i32 = arith.constant 0 : i32
    %c0_i32_0 = arith.constant 0 : i32
    %c0_i32_1 = arith.constant 0 : i32
    return %c0_i32, %c0_i32_0 : i32, i32
  }
  func.func @transform_6(%arg0: i32, %arg1: i32) -> (i32, i32, i32) {
    %c0_i32 = arith.constant 0 : i32
    %c0_i32_0 = arith.constant 0 : i32
    return %arg0, %arg1, %c0_i32 : i32, i32, i32
  }
}

</mosaic_0001>

<llo_original>
// kernel: tpu_custom_call.1
$region0: #{tpu_custom_call.1}
  #allocation0 [shape = 'u32[]', space=smem, size = 0x4, offset = 0x4, fixed_abs, tag = 'smem constant byte address 0x4 - core index']
  #allocation1 [shape = 'u32[72,128]{1,0:T(1,128)}', space=vmem, size = 0x9000, scoped, tag = 'internal scratch']
  #allocation2 [shape = 'f32[8,8,4]{2,1,0:T(8,128)}', space=vmem, size = 0x8000, scoped, tag = 'scratch operand']
  #allocation3 [shape = 'f32[8,8,4]{2,1,0:T(8,128)}', space=vmem, size = 0x8000, scoped, tag = 'scratch operand']
  %s0 = inlined_call_operand.vmem [shape: f32[2,8,32], index: 0, kind: input, shape index: {}]
  %s1 = inlined_call_operand.vmem [shape: f32[8,32,4], index: 1, kind: input, shape index: {}]
  %s2 = inlined_call_operand.vmem [shape: f32[8,32,4], index: 2, kind: input, shape index: {}]
  %s3 = inlined_call_operand.vmem [shape: f32[8,32,4], index: 3, kind: input, shape index: {}]
  %s4 = inlined_call_operand.vmem [shape: f32[8,4,32], index: 4, kind: input, shape index: {}]
  %s5 = inlined_call_operand.vmem [shape: f32[1,32], index: 5, kind: input, shape index: {}]
  %s6 = inlined_call_operand.hbm [shape: f32[2,8,32], index: 6, kind: output, shape index: {}]
  %s7 = sld [smem:[#allocation0]]
  $region61: #{tpu_custom_call.1} parent=0
    _
  %s9 = ssub.s32 1, %s7
  %s10 = scalar_select 0, %s9, %s7
  $region1: #{tpu_custom_call.1} parent=0
    #allocation4 [shape = 'u8[8192]{0}', space=vmem, size = 0x2000, scoped, tag = 'output window, operand 0']
    #allocation5 [shape = 's32[2]{0}', space=sflag, size = 0x8, scoped, tag = 'scoped memory for tpu_custom_call.1']
    %11 = vsyncpa [#allocation5], 0
    %s12 = scalar_lea.sflag [#allocation5], 1
    %13 = vsyncpa %s12, 0
    loop: start=0, step=1, limit=4
    $region2: #{tpu_custom_call.1} parent=1 // loop_pre_header
      _
    $region3: #{tpu_custom_call.1} parent=1 // loop_header
      %s15 = sphi 0, %s19
      %p16 = scmp.ge.s32.totalorder %s15, 4
      %s22 = sphi 0, %s34
      %s23 = sphi 0, %s30
      %s24 = sphi 0, %s22
      %s25 = sphi 0, %s23
      %s26 = sphi 0, %s24
      %s27 = sphi 0, %s25
      %s37 = sphi 0, %s39
      %s40 = sphi 0, %s37
      %s41 = sphi 0, %s40
      %s57 = sphi 0, %s41
      %s61 = sphi 0, %s61
      %s63 = sphi 0, %s61
      %s64 = sphi 0, %s63
      %s78 = sphi 0, %s64
      %s82 = sphi 0, %s82
      %s84 = sphi 0, %s82
      %s85 = sphi 0, %s84
      %s99 = sphi 0, %s85
      %s103 = sphi 0, %s103
      %s105 = sphi 0, %s103
      %s106 = sphi 0, %s105
      %s120 = sphi 0, %s106
      %s124 = sphi 0, %s124
      %s126 = sphi 0, %s124
      %s127 = sphi 0, %s126
      %s141 = sphi 0, %s127
      %s145 = sphi 0, %s145
      %s147 = sphi 0, %s145
      %s148 = sphi 0, %s147
      %s162 = sphi 0, %s148
      %s170 = sphi 0, %s172
      %s173 = sphi 0, %s170
      %s174 = sphi 0, %s173
      %s190 = sphi 0, %s174
    $region4: #{tpu_custom_call.1} parent=1 // loop_header_branch
      %18 = sbr.rel (%p16) target = $region8
    $region5: #{tpu_custom_call.1} parent=1 // loop_body
      %s20 = ssub.s32 %s15, 1
      %s21 = ssub.s32 %s15, 2
      %s28 = sadd.s32 1, %s23
      %p29 = scmp.ge.s32.totalorder %s28, 1
      %s30 = scalar_select %p29, 0, %s28
      %s31 = sadd.s32 1, %s22
      %s32 = scalar_select %p29, %s31, %s22
      %p33 = scmp.ge.s32.totalorder %s32, 2
      %s34 = scalar_select %p33, 0, %s32
      %s35 = ssub.s32 %s22, %s34
      %p36 = scmp.eq.s32.totalorder %s35, 0
      %s38 = sadd.s32 %s37, 1
      %s39 = scalar_select %p36, %s37, %s38
      %p42 = pneg %p36
      %p43 = scmp.eq.s32.totalorder %s15, 1
      %p44 = por %p42, %p43
      %p45 = scmp.ne.s32.totalorder %s37, %s40
      %p46 = scmp.eq.s32.totalorder %s15, 0
      %p47 = por %p45, %p46
      %p48 = scmp.ne.s32.totalorder %s37, %s40
      %p49 = scmp.eq.s32.totalorder %s20, 1
      %p50 = por %p48, %p49
      %p51 = scmp.ne.s32.totalorder %s40, %s41
      %p52 = scmp.eq.s32.totalorder %s20, 0
      %p53 = por %p51, %p52
      %p54 = scmp.ne.s32.totalorder %s40, %s41
      %p55 = scmp.eq.s32.totalorder %s21, 1
      %p56 = por %p54, %p55
      %p58 = scmp.ne.s32.totalorder %s41, %s57
      %p59 = scmp.eq.s32.totalorder %s21, 0
      %p60 = por %p58, %p59
      %s62 = sadd.s32 %s61, 1
      %p65 = scmp.eq.s32.totalorder %s15, 1
      %p66 = scmp.ne.s32.totalorder %s61, %s63
      %p67 = scmp.eq.s32.totalorder %s15, 0
      %p68 = por %p66, %p67
      %p69 = scmp.ne.s32.totalorder %s61, %s63
      %p70 = scmp.eq.s32.totalorder %s20, 1
      %p71 = por %p69, %p70
      %p72 = scmp.ne.s32.totalorder %s63, %s64
      %p73 = scmp.eq.s32.totalorder %s20, 0
      %p74 = por %p72, %p73
      %p75 = scmp.ne.s32.totalorder %s63, %s64
      %p76 = scmp.eq.s32.totalorder %s21, 1
      %p77 = por %p75, %p76
      %p79 = scmp.ne.s32.totalorder %s64, %s78
      %p80 = scmp.eq.s32.totalorder %s21, 0
      %p81 = por %p79, %p80
      %s83 = sadd.s32 %s82, 1
      %p86 = scmp.eq.s32.totalorder %s15, 1
      %p87 = scmp.ne.s32.totalorder %s82, %s84
      %p88 = scmp.eq.s32.totalorder %s15, 0
      %p89 = por %p87, %p88
      %p90 = scmp.ne.s32.totalorder %s82, %s84
      %p91 = scmp.eq.s32.totalorder %s20, 1
      %p92 = por %p90, %p91
      %p93 = scmp.ne.s32.totalorder %s84, %s85
      %p94 = scmp.eq.s32.totalorder %s20, 0
      %p95 = por %p93, %p94
      %p96 = scmp.ne.s32.totalorder %s84, %s85
      %p97 = scmp.eq.s32.totalorder %s21, 1
      %p98 = por %p96, %p97
      %p100 = scmp.ne.s32.totalorder %s85, %s99
      %p101 = scmp.eq.s32.totalorder %s21, 0
      %p102 = por %p100, %p101
      %s104 = sadd.s32 %s103, 1
      %p107 = scmp.eq.s32.totalorder %s15, 1
      %p108 = scmp.ne.s32.totalorder %s103, %s105
      %p109 = scmp.eq.s32.totalorder %s15, 0
      %p110 = por %p108, %p109
      %p111 = scmp.ne.s32.totalorder %s103, %s105
      %p112 = scmp.eq.s32.totalorder %s20, 1
      %p113 = por %p111, %p112
      %p114 = scmp.ne.s32.totalorder %s105, %s106
      %p115 = scmp.eq.s32.totalorder %s20, 0
      %p116 = por %p114, %p115
      %p117 = scmp.ne.s32.totalorder %s105, %s106
      %p118 = scmp.eq.s32.totalorder %s21, 1
      %p119 = por %p117, %p118
      %p121 = scmp.ne.s32.totalorder %s106, %s120
      %p122 = scmp.eq.s32.totalorder %s21, 0
      %p123 = por %p121, %p122
      %s125 = sadd.s32 %s124, 1
      %p128 = scmp.eq.s32.totalorder %s15, 1
      %p129 = scmp.ne.s32.totalorder %s124, %s126
      %p130 = scmp.eq.s32.totalorder %s15, 0
      %p131 = por %p129, %p130
      %p132 = scmp.ne.s32.totalorder %s124, %s126
      %p133 = scmp.eq.s32.totalorder %s20, 1
      %p134 = por %p132, %p133
      %p135 = scmp.ne.s32.totalorder %s126, %s127
      %p136 = scmp.eq.s32.totalorder %s20, 0
      %p137 = por %p135, %p136
      %p138 = scmp.ne.s32.totalorder %s126, %s127
      %p139 = scmp.eq.s32.totalorder %s21, 1
      %p140 = por %p138, %p139
      %p142 = scmp.ne.s32.totalorder %s127, %s141
      %p143 = scmp.eq.s32.totalorder %s21, 0
      %p144 = por %p142, %p143
      %s146 = sadd.s32 %s145, 1
      %p149 = scmp.eq.s32.totalorder %s15, 1
      %p150 = scmp.ne.s32.totalorder %s145, %s147
      %p151 = scmp.eq.s32.totalorder %s15, 0
      %p152 = por %p150, %p151
      %p153 = scmp.ne.s32.totalorder %s145, %s147
      %p154 = scmp.eq.s32.totalorder %s20, 1
      %p155 = por %p153, %p154
      %p156 = scmp.ne.s32.totalorder %s147, %s148
      %p157 = scmp.eq.s32.totalorder %s20, 0
      %p158 = por %p156, %p157
      %p159 = scmp.ne.s32.totalorder %s147, %s148
      %p160 = scmp.eq.s32.totalorder %s21, 1
      %p161 = por %p159, %p160
      %p163 = scmp.ne.s32.totalorder %s148, %s162
      %p164 = scmp.eq.s32.totalorder %s21, 0
      %p165 = por %p163, %p164
      %s166 = ssub.s32 %s22, %s34
      %s167 = ssub.s32 %s23, %s30
      %s168 = sor.u32 %s166, %s167
      %p169 = scmp.eq.s32.totalorder %s168, 0
      %s171 = sadd.s32 %s170, 1
      %s172 = scalar_select %p169, %s170, %s171
      %p175 = pneg %p169
      %p176 = scmp.eq.s32.totalorder %s15, 1
      %p177 = por %p175, %p176
      %p178 = scmp.ne.s32.totalorder %s170, %s173
      %p179 = scmp.eq.s32.totalorder %s15, 0
      %p180 = por %p178, %p179
      %p181 = scmp.ne.s32.totalorder %s170, %s173
      %p182 = scmp.eq.s32.totalorder %s20, 1
      %p183 = por %p181, %p182
      %p184 = scmp.ne.s32.totalorder %s173, %s174
      %p185 = scmp.eq.s32.totalorder %s20, 0
      %p186 = por %p184, %p185
      %p187 = scmp.ne.s32.totalorder %s173, %s174
      %p188 = scmp.eq.s32.totalorder %s21, 1
      %p189 = por %p187, %p188
      %p191 = scmp.ne.s32.totalorder %s174, %s190
      %p192 = scmp.eq.s32.totalorder %s21, 0
      %p193 = por %p191, %p192
      %p194 = scmp.le.s32.totalorder 1, %s15
      %p195 = scmp.lt.s32.totalorder %s15, 3
      %p196 = pnand %p194, %p195
      %p197 = pneg %p196
      // Predicated region
      $region9: #{tpu_custom_call.1} parent=5 // pred_check
        _
      $region10: #{tpu_custom_call.1} parent=5 // pred_check_branch
        %199 = sbr.rel (%p196) target = $region12
      $region11: #{tpu_custom_call.1} parent=5 // pred_region
        %s200 = ssub.s32 %s15, 1
        // Predicated region
        $region13: #{tpu_custom_call.1} parent=11 // pred_check
          %p201 = pneg %p74
        $region14: #{tpu_custom_call.1} parent=11 // pred_check_branch
          %203 = sbr.rel (%p201) target = $region16
        $region15: #{tpu_custom_call.1} parent=11 // pred_region
          _
        $region16: #{tpu_custom_call.1} parent=11 // pred_fallthru
          _
        // Predicated region
        $region17: #{tpu_custom_call.1} parent=11 // pred_check
          %p204 = pneg %p95
        $region18: #{tpu_custom_call.1} parent=11 // pred_check_branch
          %206 = sbr.rel (%p204) target = $region20
        $region19: #{tpu_custom_call.1} parent=11 // pred_region
          _
        $region20: #{tpu_custom_call.1} parent=11 // pred_fallthru
          _
        // Predicated region
        $region21: #{tpu_custom_call.1} parent=11 // pred_check
          %p207 = pneg %p116
        $region22: #{tpu_custom_call.1} parent=11 // pred_check_branch
          %209 = sbr.rel (%p207) target = $region24
        $region23: #{tpu_custom_call.1} parent=11 // pred_region
          _
        $region24: #{tpu_custom_call.1} parent=11 // pred_fallthru
          _
        // Predicated region
        $region25: #{tpu_custom_call.1} parent=11 // pred_check
          %p210 = pneg %p137
        $region26: #{tpu_custom_call.1} parent=11 // pred_check_branch
          %212 = sbr.rel (%p210) target = $region28
        $region27: #{tpu_custom_call.1} parent=11 // pred_region
          _
        $region28: #{tpu_custom_call.1} parent=11 // pred_fallthru
          _
        // Predicated region
        $region29: #{tpu_custom_call.1} parent=11 // pred_check
          %p213 = pneg %p158
        $region30: #{tpu_custom_call.1} parent=11 // pred_check_branch
          %215 = sbr.rel (%p213) target = $region32
        $region31: #{tpu_custom_call.1} parent=11 // pred_region
          _
        $region32: #{tpu_custom_call.1} parent=11 // pred_fallthru
          _
      $region12: #{tpu_custom_call.1} parent=5 // pred_fallthru
        _
      %p216 = scmp.lt.s32.totalorder %s15, 2
      // Predicated region
      $region33: #{tpu_custom_call.1} parent=5 // pred_check
        %p217 = pneg %p216
      $region34: #{tpu_custom_call.1} parent=5 // pred_check_branch
        %219 = sbr.rel (%p217) target = $region36
      $region35: #{tpu_custom_call.1} parent=5 // pred_region
        // Predicated region
        $region37: #{tpu_custom_call.1} parent=35 // pred_check
          %p220 = pneg %p47
        $region38: #{tpu_custom_call.1} parent=35 // pred_check_branch
          %222 = sbr.rel (%p220) target = $region40
        $region39: #{tpu_custom_call.1} parent=35 // pred_region
          %p223 = scmp.lt.s32.totalorder %s22, 1
          %s224 = scalar_select %p223, %s22, 1
          %s225 = smul.addr %s224, 8
          %s226 = scalar_lea.vmem %s0, %s225
        $region40: #{tpu_custom_call.1} parent=35 // pred_fallthru
          _
      $region36: #{tpu_custom_call.1} parent=5 // pred_fallthru
        _
      %p227 = scmp.le.s32.totalorder 1, %s15
      %p228 = scmp.lt.s32.totalorder %s15, 3
      %p229 = pnand %p227, %p228
      %p230 = pneg %p229
      // Predicated region
      $region41: #{tpu_custom_call.1} parent=5 // pred_check
        _
      $region42: #{tpu_custom_call.1} parent=5 // pred_check_branch
        %232 = sbr.rel (%p229) target = $region44
      $region43: #{tpu_custom_call.1} parent=5 // pred_region
        %s233 = ssub.s32 %s15, 1
        %p234 = scmp.lt.s32.totalorder %s24, 1
        %s235 = scalar_select %p234, %s24, 1
        %s236 = smul.addr %s235, 8
        %s237 = scalar_lea.vmem %s0, %s236
        %p238 = pneg %p53
        %p239 = pneg %p50
        %p240 = pneg %p74
        %p241 = pneg %p71
        %p242 = pneg %p95
        %p243 = pneg %p92
        %p244 = pneg %p116
        %p245 = pneg %p113
        %p246 = pneg %p137
        %p247 = pneg %p134
        %p248 = pneg %p158
        %p249 = pneg %p155
        %p250 = pneg %p186
        %p251 = pneg %p183
        %s252 = sand.u32 %s173, 1
        %s253 = scalar_lea.sflag [#allocation5], %s252
        %s254 = sand.u32 %s173, 1
        %s255 = smul.addr %s254, 8
        %s256 = scalar_lea.vmem [#allocation4], %s255
        %p257 = scmp.lt.s32.totalorder %s24, 1
        %s258 = scalar_select %p257, %s24, 1
        %s259 = smul.addr %s258, 8
        %s260 = scalar_lea.vmem %s0, %s259
        %p261 = scmp.eq.s32.totalorder %s25, 0
        // Predicated region
        $region45: #{tpu_custom_call.1} parent=43 // pred_check
          %p262 = pneg %p261
        $region46: #{tpu_custom_call.1} parent=43 // pred_check_branch
          %264 = sbr.rel (%p262) target = $region48
        $region47: #{tpu_custom_call.1} parent=43 // pred_region
          %v265 = vld [vmem:[%s260] sm:$0xff]
          %v266 = vld [vmem:[%s2] sm:$0xff]
          %v267 = vld [vmem:[%s2 + $0x8] sm:$0xff]
          %v268 = vld [vmem:[%s2 + $0x10] sm:$0xff]
          %v269 = vld [vmem:[%s2 + $0x18] sm:$0xff]
          %v270 = vld [vmem:[%s2 + $0x20] sm:$0xff]
          %v271 = vld [vmem:[%s2 + $0x28] sm:$0xff]
          %v272 = vld [vmem:[%s2 + $0x30] sm:$0xff]
          %v273 = vld [vmem:[%s2 + $0x38] sm:$0xff]
          %v274 = vld [vmem:[%s2 + $0x40] sm:$0xff]
          %v275 = vld [vmem:[%s2 + $0x48] sm:$0xff]
          %v276 = vld [vmem:[%s2 + $0x50] sm:$0xff]
          %v277 = vld [vmem:[%s2 + $0x58] sm:$0xff]
          %v278 = vld [vmem:[%s2 + $0x60] sm:$0xff]
          %v279 = vld [vmem:[%s2 + $0x68] sm:$0xff]
          %v280 = vld [vmem:[%s2 + $0x70] sm:$0xff]
          %v281 = vld [vmem:[%s2 + $0x78] sm:$0xff]
          %v282 = vld [vmem:[%s2 + $0x80] sm:$0xff]
          %v283 = vld [vmem:[%s2 + $0x88] sm:$0xff]
          %v284 = vld [vmem:[%s2 + $0x90] sm:$0xff]
          %v285 = vld [vmem:[%s2 + $0x98] sm:$0xff]
          %v286 = vld [vmem:[%s2 + $0xa0] sm:$0xff]
          %v287 = vld [vmem:[%s2 + $0xa8] sm:$0xff]
          %v288 = vld [vmem:[%s2 + $0xb0] sm:$0xff]
          %v289 = vld [vmem:[%s2 + $0xb8] sm:$0xff]
          %v290 = vld [vmem:[%s2 + $0xc0] sm:$0xff]
          %v291 = vld [vmem:[%s2 + $0xc8] sm:$0xff]
          %v292 = vld [vmem:[%s2 + $0xd0] sm:$0xff]
          %v293 = vld [vmem:[%s2 + $0xd8] sm:$0xff]
          %v294 = vld [vmem:[%s2 + $0xe0] sm:$0xff]
          %v295 = vld [vmem:[%s2 + $0xe8] sm:$0xff]
          %v296 = vld [vmem:[%s2 + $0xf0] sm:$0xff]
          %v297 = vld [vmem:[%s2 + $0xf8] sm:$0xff]
          %vm298 = vcmask 261120
          %v300 = vsel %vm298, %v265, 0
          %302 = vmatpush.msra.mxu0 0.0
          %303 = vmatpush.msra.mxu0 0.0
          %304 = vmatpush.msra.mxu0 0.0
          %305 = vmatpush.msra.mxu0 0.0
          %306 = vmatpush.msra.mxu0 0.0
          %307 = vmatpush.msra.mxu0 0.0
          %308 = vmatpush.msra.mxu0 0.0
          %309 = vmatpush.msra.mxu0 0.0
          %310 = vmatpush.msra.mxu0 0.0
          %311 = vmatpush.msra.mxu0 0.0
          %312 = vmatpush.msra.mxu0 0.0
          %313 = vmatpush.msra.mxu0 0.0
          %314 = vmatpush.msra.mxu0 %v269
          %315 = vmatpush.msra.mxu0 %v268
          %316 = vmatpush.msra.mxu0 %v267
          %317 = vmatpush.msra.mxu0 %v266
          %318 = vmatmul.f32.gmra.mxu0 %v300
          %v319 = vpop.f32.mrf.mxu0
          %v320 = vadd.f32 0.0, %v319
          %321 = vdwg.mxu0
          %322 = vmatpush.msra.mxu0 0.0
          %323 = vmatpush.msra.mxu0 0.0
          %324 = vmatpush.msra.mxu0 0.0
          %325 = vmatpush.msra.mxu0 0.0
          %326 = vmatpush.msra.mxu0 0.0
          %327 = vmatpush.msra.mxu0 0.0
          %328 = vmatpush.msra.mxu0 0.0
          %329 = vmatpush.msra.mxu0 0.0
          %330 = vmatpush.msra.mxu0 0.0
          %331 = vmatpush.msra.mxu0 0.0
          %332 = vmatpush.msra.mxu0 0.0
          %333 = vmatpush.msra.mxu0 0.0
          %334 = vmatpush.msra.mxu0 %v273
          %335 = vmatpush.msra.mxu0 %v272
          %336 = vmatpush.msra.mxu0 %v271
          %337 = vmatpush.msra.mxu0 %v270
          %338 = vmatmul.f32.gmra.mxu0 %v300
          %v339 = vpop.f32.mrf.mxu0
          %v340 = vadd.f32 0.0, %v339
          %341 = vdwg.mxu0
          %342 = vmatpush.msra.mxu0 0.0
          %343 = vmatpush.msra.mxu0 0.0
          %344 = vmatpush.msra.mxu0 0.0
          %345 = vmatpush.msra.mxu0 0.0
          %346 = vmatpush.msra.mxu0 0.0
          %347 = vmatpush.msra.mxu0 0.0
          %348 = vmatpush.msra.mxu0 0.0
          %349 = vmatpush.msra.mxu0 0.0
          %350 = vmatpush.msra.mxu0 0.0
          %351 = vmatpush.msra.mxu0 0.0
          %352 = vmatpush.msra.mxu0 0.0
          %353 = vmatpush.msra.mxu0 0.0
          %354 = vmatpush.msra.mxu0 %v277
          %355 = vmatpush.msra.mxu0 %v276
          %356 = vmatpush.msra.mxu0 %v275
          %357 = vmatpush.msra.mxu0 %v274
          %358 = vmatmul.f32.gmra.mxu0 %v300
          %v359 = vpop.f32.mrf.mxu0
          %v360 = vadd.f32 0.0, %v359
          %361 = vdwg.mxu0
          %362 = vmatpush.msra.mxu0 0.0
          %363 = vmatpush.msra.mxu0 0.0
          %364 = vmatpush.msra.mxu0 0.0
          %365 = vmatpush.msra.mxu0 0.0
          %366 = vmatpush.msra.mxu0 0.0
          %367 = vmatpush.msra.mxu0 0.0
          %368 = vmatpush.msra.mxu0 0.0
          %369 = vmatpush.msra.mxu0 0.0
          %370 = vmatpush.msra.mxu0 0.0
          %371 = vmatpush.msra.mxu0 0.0
          %372 = vmatpush.msra.mxu0 0.0
          %373 = vmatpush.msra.mxu0 0.0
          %374 = vmatpush.msra.mxu0 %v281
          %375 = vmatpush.msra.mxu0 %v280
          %376 = vmatpush.msra.mxu0 %v279
          %377 = vmatpush.msra.mxu0 %v278
          %378 = vmatmul.f32.gmra.mxu0 %v300
          %v379 = vpop.f32.mrf.mxu0
          %v380 = vadd.f32 0.0, %v379
          %381 = vdwg.mxu0
          %382 = vmatpush.msra.mxu0 0.0
          %383 = vmatpush.msra.mxu0 0.0
          %384 = vmatpush.msra.mxu0 0.0
          %385 = vmatpush.msra.mxu0 0.0
          %386 = vmatpush.msra.mxu0 0.0
          %387 = vmatpush.msra.mxu0 0.0
          %388 = vmatpush.msra.mxu0 0.0
          %389 = vmatpush.msra.mxu0 0.0
          %390 = vmatpush.msra.mxu0 0.0
          %391 = vmatpush.msra.mxu0 0.0
          %392 = vmatpush.msra.mxu0 0.0
          %393 = vmatpush.msra.mxu0 0.0
          %394 = vmatpush.msra.mxu0 %v285
          %395 = vmatpush.msra.mxu0 %v284
          %396 = vmatpush.msra.mxu0 %v283
          %397 = vmatpush.msra.mxu0 %v282
          %398 = vmatmul.f32.gmra.mxu0 %v300
          %v399 = vpop.f32.mrf.mxu0
          %v400 = vadd.f32 0.0, %v399
          %401 = vdwg.mxu0
          %402 = vmatpush.msra.mxu0 0.0
          %403 = vmatpush.msra.mxu0 0.0
          %404 = vmatpush.msra.mxu0 0.0
          %405 = vmatpush.msra.mxu0 0.0
          %406 = vmatpush.msra.mxu0 0.0
          %407 = vmatpush.msra.mxu0 0.0
          %408 = vmatpush.msra.mxu0 0.0
          %409 = vmatpush.msra.mxu0 0.0
          %410 = vmatpush.msra.mxu0 0.0
          %411 = vmatpush.msra.mxu0 0.0
          %412 = vmatpush.msra.mxu0 0.0
          %413 = vmatpush.msra.mxu0 0.0
          %414 = vmatpush.msra.mxu0 %v289
          %415 = vmatpush.msra.mxu0 %v288
          %416 = vmatpush.msra.mxu0 %v287
          %417 = vmatpush.msra.mxu0 %v286
          %418 = vmatmul.f32.gmra.mxu0 %v300
          %v419 = vpop.f32.mrf.mxu0
          %v420 = vadd.f32 0.0, %v419
          %421 = vdwg.mxu0
          %422 = vmatpush.msra.mxu0 0.0
          %423 = vmatpush.msra.mxu0 0.0
          %424 = vmatpush.msra.mxu0 0.0
          %425 = vmatpush.msra.mxu0 0.0
          %426 = vmatpush.msra.mxu0 0.0
          %427 = vmatpush.msra.mxu0 0.0
          %428 = vmatpush.msra.mxu0 0.0
          %429 = vmatpush.msra.mxu0 0.0
          %430 = vmatpush.msra.mxu0 0.0
          %431 = vmatpush.msra.mxu0 0.0
          %432 = vmatpush.msra.mxu0 0.0
          %433 = vmatpush.msra.mxu0 0.0
          %434 = vmatpush.msra.mxu0 %v293
          %435 = vmatpush.msra.mxu0 %v292
          %436 = vmatpush.msra.mxu0 %v291
          %437 = vmatpush.msra.mxu0 %v290
          %438 = vmatmul.f32.gmra.mxu0 %v300
          %v439 = vpop.f32.mrf.mxu0
          %v440 = vadd.f32 0.0, %v439
          %441 = vdwg.mxu0
          %442 = vmatpush.msra.mxu0 0.0
          %443 = vmatpush.msra.mxu0 0.0
          %444 = vmatpush.msra.mxu0 0.0
          %445 = vmatpush.msra.mxu0 0.0
          %446 = vmatpush.msra.mxu0 0.0
          %447 = vmatpush.msra.mxu0 0.0
          %448 = vmatpush.msra.mxu0 0.0
          %449 = vmatpush.msra.mxu0 0.0
          %450 = vmatpush.msra.mxu0 0.0
          %451 = vmatpush.msra.mxu0 0.0
          %452 = vmatpush.msra.mxu0 0.0
          %453 = vmatpush.msra.mxu0 0.0
          %454 = vmatpush.msra.mxu0 %v297
          %455 = vmatpush.msra.mxu0 %v296
          %456 = vmatpush.msra.mxu0 %v295
          %457 = vmatpush.msra.mxu0 %v294
          %458 = vmatmul.f32.gmra.mxu0 %v300
          %v459 = vpop.f32.mrf.mxu0
          %v460 = vadd.f32 0.0, %v459
          %461 = vdwg.mxu0
          %vm462 = vcmask 31744
          %463 = vst.msk [vmem:[#allocation2] sm:$0xff] %vm462, %v320
          %464 = vst.msk [vmem:[#allocation2 + $0x8] sm:$0xff] %vm462, %v340
          %465 = vst.msk [vmem:[#allocation2 + $0x10] sm:$0xff] %vm462, %v360
          %466 = vst.msk [vmem:[#allocation2 + $0x18] sm:$0xff] %vm462, %v380
          %467 = vst.msk [vmem:[#allocation2 + $0x20] sm:$0xff] %vm462, %v400
          %468 = vst.msk [vmem:[#allocation2 + $0x28] sm:$0xff] %vm462, %v420
          %469 = vst.msk [vmem:[#allocation2 + $0x30] sm:$0xff] %vm462, %v440
          %470 = vst.msk [vmem:[#allocation2 + $0x38] sm:$0xff] %vm462, %v460
          %v471 = vld [vmem:[%s3] sm:$0xff]
          %v472 = vld [vmem:[%s3 + $0x8] sm:$0xff]
          %v473 = vld [vmem:[%s3 + $0x10] sm:$0xff]
          %v474 = vld [vmem:[%s3 + $0x18] sm:$0xff]
          %v475 = vld [vmem:[%s3 + $0x20] sm:$0xff]
          %v476 = vld [vmem:[%s3 + $0x28] sm:$0xff]
          %v477 = vld [vmem:[%s3 + $0x30] sm:$0xff]
          %v478 = vld [vmem:[%s3 + $0x38] sm:$0xff]
          %v479 = vld [vmem:[%s3 + $0x40] sm:$0xff]
          %v480 = vld [vmem:[%s3 + $0x48] sm:$0xff]
          %v481 = vld [vmem:[%s3 + $0x50] sm:$0xff]
          %v482 = vld [vmem:[%s3 + $0x58] sm:$0xff]
          %v483 = vld [vmem:[%s3 + $0x60] sm:$0xff]
          %v484 = vld [vmem:[%s3 + $0x68] sm:$0xff]
          %v485 = vld [vmem:[%s3 + $0x70] sm:$0xff]
          %v486 = vld [vmem:[%s3 + $0x78] sm:$0xff]
          %v487 = vld [vmem:[%s3 + $0x80] sm:$0xff]
          %v488 = vld [vmem:[%s3 + $0x88] sm:$0xff]
          %v489 = vld [vmem:[%s3 + $0x90] sm:$0xff]
          %v490 = vld [vmem:[%s3 + $0x98] sm:$0xff]
          %v491 = vld [vmem:[%s3 + $0xa0] sm:$0xff]
          %v492 = vld [vmem:[%s3 + $0xa8] sm:$0xff]
          %v493 = vld [vmem:[%s3 + $0xb0] sm:$0xff]
          %v494 = vld [vmem:[%s3 + $0xb8] sm:$0xff]
          %v495 = vld [vmem:[%s3 + $0xc0] sm:$0xff]
          %v496 = vld [vmem:[%s3 + $0xc8] sm:$0xff]
          %v497 = vld [vmem:[%s3 + $0xd0] sm:$0xff]
          %v498 = vld [vmem:[%s3 + $0xd8] sm:$0xff]
          %v499 = vld [vmem:[%s3 + $0xe0] sm:$0xff]
          %v500 = vld [vmem:[%s3 + $0xe8] sm:$0xff]
          %v501 = vld [vmem:[%s3 + $0xf0] sm:$0xff]
          %v502 = vld [vmem:[%s3 + $0xf8] sm:$0xff]
          %503 = vmatpush.msra.mxu0 0.0
          %504 = vmatpush.msra.mxu0 0.0
          %505 = vmatpush.msra.mxu0 0.0
          %506 = vmatpush.msra.mxu0 0.0
          %507 = vmatpush.msra.mxu0 0.0
          %508 = vmatpush.msra.mxu0 0.0
          %509 = vmatpush.msra.mxu0 0.0
          %510 = vmatpush.msra.mxu0 0.0
          %511 = vmatpush.msra.mxu0 0.0
          %512 = vmatpush.msra.mxu0 0.0
          %513 = vmatpush.msra.mxu0 0.0
          %514 = vmatpush.msra.mxu0 0.0
          %515 = vmatpush.msra.mxu0 %v474
          %516 = vmatpush.msra.mxu0 %v473
          %517 = vmatpush.msra.mxu0 %v472
          %518 = vmatpush.msra.mxu0 %v471
          %519 = vmatmul.f32.gmra.mxu0 %v300
          %v520 = vpop.f32.mrf.mxu0
          %v521 = vadd.f32 0.0, %v520
          %522 = vdwg.mxu0
          %523 = vmatpush.msra.mxu0 0.0
          %524 = vmatpush.msra.mxu0 0.0
          %525 = vmatpush.msra.mxu0 0.0
          %526 = vmatpush.msra.mxu0 0.0
          %527 = vmatpush.msra.mxu0 0.0
          %528 = vmatpush.msra.mxu0 0.0
          %529 = vmatpush.msra.mxu0 0.0
          %530 = vmatpush.msra.mxu0 0.0
          %531 = vmatpush.msra.mxu0 0.0
          %532 = vmatpush.msra.mxu0 0.0
          %533 = vmatpush.msra.mxu0 0.0
          %534 = vmatpush.msra.mxu0 0.0
          %535 = vmatpush.msra.mxu0 %v478
          %536 = vmatpush.msra.mxu0 %v477
          %537 = vmatpush.msra.mxu0 %v476
          %538 = vmatpush.msra.mxu0 %v475
          %539 = vmatmul.f32.gmra.mxu0 %v300
          %v540 = vpop.f32.mrf.mxu0
          %v541 = vadd.f32 0.0, %v540
          %542 = vdwg.mxu0
          %543 = vmatpush.msra.mxu0 0.0
          %544 = vmatpush.msra.mxu0 0.0
          %545 = vmatpush.msra.mxu0 0.0
          %546 = vmatpush.msra.mxu0 0.0
          %547 = vmatpush.msra.mxu0 0.0
          %548 = vmatpush.msra.mxu0 0.0
          %549 = vmatpush.msra.mxu0 0.0
          %550 = vmatpush.msra.mxu0 0.0
          %551 = vmatpush.msra.mxu0 0.0
          %552 = vmatpush.msra.mxu0 0.0
          %553 = vmatpush.msra.mxu0 0.0
          %554 = vmatpush.msra.mxu0 0.0
          %555 = vmatpush.msra.mxu0 %v482
          %556 = vmatpush.msra.mxu0 %v481
          %557 = vmatpush.msra.mxu0 %v480
          %558 = vmatpush.msra.mxu0 %v479
          %559 = vmatmul.f32.gmra.mxu0 %v300
          %v560 = vpop.f32.mrf.mxu0
          %v561 = vadd.f32 0.0, %v560
          %562 = vdwg.mxu0
          %563 = vmatpush.msra.mxu0 0.0
          %564 = vmatpush.msra.mxu0 0.0
          %565 = vmatpush.msra.mxu0 0.0
          %566 = vmatpush.msra.mxu0 0.0
          %567 = vmatpush.msra.mxu0 0.0
          %568 = vmatpush.msra.mxu0 0.0
          %569 = vmatpush.msra.mxu0 0.0
          %570 = vmatpush.msra.mxu0 0.0
          %571 = vmatpush.msra.mxu0 0.0
          %572 = vmatpush.msra.mxu0 0.0
          %573 = vmatpush.msra.mxu0 0.0
          %574 = vmatpush.msra.mxu0 0.0
          %575 = vmatpush.msra.mxu0 %v486
          %576 = vmatpush.msra.mxu0 %v485
          %577 = vmatpush.msra.mxu0 %v484
          %578 = vmatpush.msra.mxu0 %v483
          %579 = vmatmul.f32.gmra.mxu0 %v300
          %v580 = vpop.f32.mrf.mxu0
          %v581 = vadd.f32 0.0, %v580
          %582 = vdwg.mxu0
          %583 = vmatpush.msra.mxu0 0.0
          %584 = vmatpush.msra.mxu0 0.0
          %585 = vmatpush.msra.mxu0 0.0
          %586 = vmatpush.msra.mxu0 0.0
          %587 = vmatpush.msra.mxu0 0.0
          %588 = vmatpush.msra.mxu0 0.0
          %589 = vmatpush.msra.mxu0 0.0
          %590 = vmatpush.msra.mxu0 0.0
          %591 = vmatpush.msra.mxu0 0.0
          %592 = vmatpush.msra.mxu0 0.0
          %593 = vmatpush.msra.mxu0 0.0
          %594 = vmatpush.msra.mxu0 0.0
          %595 = vmatpush.msra.mxu0 %v490
          %596 = vmatpush.msra.mxu0 %v489
          %597 = vmatpush.msra.mxu0 %v488
          %598 = vmatpush.msra.mxu0 %v487
          %599 = vmatmul.f32.gmra.mxu0 %v300
          %v600 = vpop.f32.mrf.mxu0
          %v601 = vadd.f32 0.0, %v600
          %602 = vdwg.mxu0
          %603 = vmatpush.msra.mxu0 0.0
          %604 = vmatpush.msra.mxu0 0.0
          %605 = vmatpush.msra.mxu0 0.0
          %606 = vmatpush.msra.mxu0 0.0
          %607 = vmatpush.msra.mxu0 0.0
          %608 = vmatpush.msra.mxu0 0.0
          %609 = vmatpush.msra.mxu0 0.0
          %610 = vmatpush.msra.mxu0 0.0
          %611 = vmatpush.msra.mxu0 0.0
          %612 = vmatpush.msra.mxu0 0.0
          %613 = vmatpush.msra.mxu0 0.0
          %614 = vmatpush.msra.mxu0 0.0
          %615 = vmatpush.msra.mxu0 %v494
          %616 = vmatpush.msra.mxu0 %v493
          %617 = vmatpush.msra.mxu0 %v492
          %618 = vmatpush.msra.mxu0 %v491
          %619 = vmatmul.f32.gmra.mxu0 %v300
          %v620 = vpop.f32.mrf.mxu0
          %v621 = vadd.f32 0.0, %v620
          %622 = vdwg.mxu0
          %623 = vmatpush.msra.mxu0 0.0
          %624 = vmatpush.msra.mxu0 0.0
          %625 = vmatpush.msra.mxu0 0.0
          %626 = vmatpush.msra.mxu0 0.0
          %627 = vmatpush.msra.mxu0 0.0
          %628 = vmatpush.msra.mxu0 0.0
          %629 = vmatpush.msra.mxu0 0.0
          %630 = vmatpush.msra.mxu0 0.0
          %631 = vmatpush.msra.mxu0 0.0
          %632 = vmatpush.msra.mxu0 0.0
          %633 = vmatpush.msra.mxu0 0.0
          %634 = vmatpush.msra.mxu0 0.0
          %635 = vmatpush.msra.mxu0 %v498
          %636 = vmatpush.msra.mxu0 %v497
          %637 = vmatpush.msra.mxu0 %v496
          %638 = vmatpush.msra.mxu0 %v495
          %639 = vmatmul.f32.gmra.mxu0 %v300
          %v640 = vpop.f32.mrf.mxu0
          %v641 = vadd.f32 0.0, %v640
          %642 = vdwg.mxu0
          %643 = vmatpush.msra.mxu0 0.0
          %644 = vmatpush.msra.mxu0 0.0
          %645 = vmatpush.msra.mxu0 0.0
          %646 = vmatpush.msra.mxu0 0.0
          %647 = vmatpush.msra.mxu0 0.0
          %648 = vmatpush.msra.mxu0 0.0
          %649 = vmatpush.msra.mxu0 0.0
          %650 = vmatpush.msra.mxu0 0.0
          %651 = vmatpush.msra.mxu0 0.0
          %652 = vmatpush.msra.mxu0 0.0
          %653 = vmatpush.msra.mxu0 0.0
          %654 = vmatpush.msra.mxu0 0.0
          %655 = vmatpush.msra.mxu0 %v502
          %656 = vmatpush.msra.mxu0 %v501
          %657 = vmatpush.msra.mxu0 %v500
          %658 = vmatpush.msra.mxu0 %v499
          %659 = vmatmul.f32.gmra.mxu0 %v300
          %v660 = vpop.f32.mrf.mxu0
          %v661 = vadd.f32 0.0, %v660
          %662 = vdwg.mxu0
          %663 = vst.msk [vmem:[#allocation3] sm:$0xff] %vm462, %v521
          %664 = vst.msk [vmem:[#allocation3 + $0x8] sm:$0xff] %vm462, %v541
          %665 = vst.msk [vmem:[#allocation3 + $0x10] sm:$0xff] %vm462, %v561
          %666 = vst.msk [vmem:[#allocation3 + $0x18] sm:$0xff] %vm462, %v581
          %667 = vst.msk [vmem:[#allocation3 + $0x20] sm:$0xff] %vm462, %v601
          %668 = vst.msk [vmem:[#allocation3 + $0x28] sm:$0xff] %vm462, %v621
          %669 = vst.msk [vmem:[#allocation3 + $0x30] sm:$0xff] %vm462, %v641
          %670 = vst.msk [vmem:[#allocation3 + $0x38] sm:$0xff] %vm462, %v661
        $region48: #{tpu_custom_call.1} parent=43 // pred_fallthru
          _
        %s671 = smul.u32 %s25, 8
        %s672 = scalar_lea.vmem %s260, %s671
        %v673 = vld [vmem:[%s672] sm:$0xff]
        %v674 = vld [vmem:[%s1] sm:$0xff]
        %v675 = vld [vmem:[%s1 + $0x8] sm:$0xff]
        %v676 = vld [vmem:[%s1 + $0x10] sm:$0xff]
        %v677 = vld [vmem:[%s1 + $0x18] sm:$0xff]
        %v678 = vld [vmem:[%s1 + $0x20] sm:$0xff]
        %v679 = vld [vmem:[%s1 + $0x28] sm:$0xff]
        %v680 = vld [vmem:[%s1 + $0x30] sm:$0xff]
        %v681 = vld [vmem:[%s1 + $0x38] sm:$0xff]
        %v682 = vld [vmem:[%s1 + $0x40] sm:$0xff]
        %v683 = vld [vmem:[%s1 + $0x48] sm:$0xff]
        %v684 = vld [vmem:[%s1 + $0x50] sm:$0xff]
        %v685 = vld [vmem:[%s1 + $0x58] sm:$0xff]
        %v686 = vld [vmem:[%s1 + $0x60] sm:$0xff]
        %v687 = vld [vmem:[%s1 + $0x68] sm:$0xff]
        %v688 = vld [vmem:[%s1 + $0x70] sm:$0xff]
        %v689 = vld [vmem:[%s1 + $0x78] sm:$0xff]
        %v690 = vld [vmem:[%s1 + $0x80] sm:$0xff]
        %v691 = vld [vmem:[%s1 + $0x88] sm:$0xff]
        %v692 = vld [vmem:[%s1 + $0x90] sm:$0xff]
        %v693 = vld [vmem:[%s1 + $0x98] sm:$0xff]
        %v694 = vld [vmem:[%s1 + $0xa0] sm:$0xff]
        %v695 = vld [vmem:[%s1 + $0xa8] sm:$0xff]
        %v696 = vld [vmem:[%s1 + $0xb0] sm:$0xff]
        %v697 = vld [vmem:[%s1 + $0xb8] sm:$0xff]
        %v698 = vld [vmem:[%s1 + $0xc0] sm:$0xff]
        %v699 = vld [vmem:[%s1 + $0xc8] sm:$0xff]
        %v700 = vld [vmem:[%s1 + $0xd0] sm:$0xff]
        %v701 = vld [vmem:[%s1 + $0xd8] sm:$0xff]
        %v702 = vld [vmem:[%s1 + $0xe0] sm:$0xff]
        %v703 = vld [vmem:[%s1 + $0xe8] sm:$0xff]
        %v704 = vld [vmem:[%s1 + $0xf0] sm:$0xff]
        %v705 = vld [vmem:[%s1 + $0xf8] sm:$0xff]
        %vm706 = vcmask 261120
        %v708 = vsel %vm706, %v673, 0
        %710 = vmatpush.msra.mxu0 0.0
        %711 = vmatpush.msra.mxu0 0.0
        %712 = vmatpush.msra.mxu0 0.0
        %713 = vmatpush.msra.mxu0 0.0
        %714 = vmatpush.msra.mxu0 0.0
        %715 = vmatpush.msra.mxu0 0.0
        %716 = vmatpush.msra.mxu0 0.0
        %717 = vmatpush.msra.mxu0 0.0
        %718 = vmatpush.msra.mxu0 0.0
        %719 = vmatpush.msra.mxu0 0.0
        %720 = vmatpush.msra.mxu0 0.0
        %721 = vmatpush.msra.mxu0 0.0
        %722 = vmatpush.msra.mxu0 %v677
        %723 = vmatpush.msra.mxu0 %v676
        %724 = vmatpush.msra.mxu0 %v675
        %725 = vmatpush.msra.mxu0 %v674
        %726 = vmatmul.f32.gmra.mxu0 %v708
        %v727 = vpop.f32.mrf.mxu0
        %v728 = vadd.f32 0.0, %v727
        %729 = vdwg.mxu0
        %730 = vmatpush.msra.mxu0 0.0
        %731 = vmatpush.msra.mxu0 0.0
        %732 = vmatpush.msra.mxu0 0.0
        %733 = vmatpush.msra.mxu0 0.0
        %734 = vmatpush.msra.mxu0 0.0
        %735 = vmatpush.msra.mxu0 0.0
        %736 = vmatpush.msra.mxu0 0.0
        %737 = vmatpush.msra.mxu0 0.0
        %738 = vmatpush.msra.mxu0 0.0
        %739 = vmatpush.msra.mxu0 0.0
        %740 = vmatpush.msra.mxu0 0.0
        %741 = vmatpush.msra.mxu0 0.0
        %742 = vmatpush.msra.mxu0 %v681
        %743 = vmatpush.msra.mxu0 %v680
        %744 = vmatpush.msra.mxu0 %v679
        %745 = vmatpush.msra.mxu0 %v678
        %746 = vmatmul.f32.gmra.mxu0 %v708
        %v747 = vpop.f32.mrf.mxu0
        %v748 = vadd.f32 0.0, %v747
        %749 = vdwg.mxu0
        %750 = vmatpush.msra.mxu0 0.0
        %751 = vmatpush.msra.mxu0 0.0
        %752 = vmatpush.msra.mxu0 0.0
        %753 = vmatpush.msra.mxu0 0.0
        %754 = vmatpush.msra.mxu0 0.0
        %755 = vmatpush.msra.mxu0 0.0
        %756 = vmatpush.msra.mxu0 0.0
        %757 = vmatpush.msra.mxu0 0.0
        %758 = vmatpush.msra.mxu0 0.0
        %759 = vmatpush.msra.mxu0 0.0
        %760 = vmatpush.msra.mxu0 0.0
        %761 = vmatpush.msra.mxu0 0.0
        %762 = vmatpush.msra.mxu0 %v685
        %763 = vmatpush.msra.mxu0 %v684
        %764 = vmatpush.msra.mxu0 %v683
        %765 = vmatpush.msra.mxu0 %v682
        %766 = vmatmul.f32.gmra.mxu0 %v708
        %v767 = vpop.f32.mrf.mxu0
        %v768 = vadd.f32 0.0, %v767
        %769 = vdwg.mxu0
        %770 = vmatpush.msra.mxu0 0.0
        %771 = vmatpush.msra.mxu0 0.0
        %772 = vmatpush.msra.mxu0 0.0
        %773 = vmatpush.msra.mxu0 0.0
        %774 = vmatpush.msra.mxu0 0.0
        %775 = vmatpush.msra.mxu0 0.0
        %776 = vmatpush.msra.mxu0 0.0
        %777 = vmatpush.msra.mxu0 0.0
        %778 = vmatpush.msra.mxu0 0.0
        %779 = vmatpush.msra.mxu0 0.0
        %780 = vmatpush.msra.mxu0 0.0
        %781 = vmatpush.msra.mxu0 0.0
        %782 = vmatpush.msra.mxu0 %v689
        %783 = vmatpush.msra.mxu0 %v688
        %784 = vmatpush.msra.mxu0 %v687
        %785 = vmatpush.msra.mxu0 %v686
        %786 = vmatmul.f32.gmra.mxu0 %v708
        %v787 = vpop.f32.mrf.mxu0
        %v788 = vadd.f32 0.0, %v787
        %789 = vdwg.mxu0
        %790 = vmatpush.msra.mxu0 0.0
        %791 = vmatpush.msra.mxu0 0.0
        %792 = vmatpush.msra.mxu0 0.0
        %793 = vmatpush.msra.mxu0 0.0
        %794 = vmatpush.msra.mxu0 0.0
        %795 = vmatpush.msra.mxu0 0.0
        %796 = vmatpush.msra.mxu0 0.0
        %797 = vmatpush.msra.mxu0 0.0
        %798 = vmatpush.msra.mxu0 0.0
        %799 = vmatpush.msra.mxu0 0.0
        %800 = vmatpush.msra.mxu0 0.0
        %801 = vmatpush.msra.mxu0 0.0
        %802 = vmatpush.msra.mxu0 %v693
        %803 = vmatpush.msra.mxu0 %v692
        %804 = vmatpush.msra.mxu0 %v691
        %805 = vmatpush.msra.mxu0 %v690
        %806 = vmatmul.f32.gmra.mxu0 %v708
        %v807 = vpop.f32.mrf.mxu0
        %v808 = vadd.f32 0.0, %v807
        %809 = vdwg.mxu0
        %810 = vmatpush.msra.mxu0 0.0
        %811 = vmatpush.msra.mxu0 0.0
        %812 = vmatpush.msra.mxu0 0.0
        %813 = vmatpush.msra.mxu0 0.0
        %814 = vmatpush.msra.mxu0 0.0
        %815 = vmatpush.msra.mxu0 0.0
        %816 = vmatpush.msra.mxu0 0.0
        %817 = vmatpush.msra.mxu0 0.0
        %818 = vmatpush.msra.mxu0 0.0
        %819 = vmatpush.msra.mxu0 0.0
        %820 = vmatpush.msra.mxu0 0.0
        %821 = vmatpush.msra.mxu0 0.0
        %822 = vmatpush.msra.mxu0 %v697
        %823 = vmatpush.msra.mxu0 %v696
        %824 = vmatpush.msra.mxu0 %v695
        %825 = vmatpush.msra.mxu0 %v694
        %826 = vmatmul.f32.gmra.mxu0 %v708
        %v827 = vpop.f32.mrf.mxu0
        %v828 = vadd.f32 0.0, %v827
        %829 = vdwg.mxu0
        %830 = vmatpush.msra.mxu0 0.0
        %831 = vmatpush.msra.mxu0 0.0
        %832 = vmatpush.msra.mxu0 0.0
        %833 = vmatpush.msra.mxu0 0.0
        %834 = vmatpush.msra.mxu0 0.0
        %835 = vmatpush.msra.mxu0 0.0
        %836 = vmatpush.msra.mxu0 0.0
        %837 = vmatpush.msra.mxu0 0.0
        %838 = vmatpush.msra.mxu0 0.0
        %839 = vmatpush.msra.mxu0 0.0
        %840 = vmatpush.msra.mxu0 0.0
        %841 = vmatpush.msra.mxu0 0.0
        %842 = vmatpush.msra.mxu0 %v701
        %843 = vmatpush.msra.mxu0 %v700
        %844 = vmatpush.msra.mxu0 %v699
        %845 = vmatpush.msra.mxu0 %v698
        %846 = vmatmul.f32.gmra.mxu0 %v708
        %v847 = vpop.f32.mrf.mxu0
        %v848 = vadd.f32 0.0, %v847
        %849 = vdwg.mxu0
        %850 = vmatpush.msra.mxu0 0.0
        %851 = vmatpush.msra.mxu0 0.0
        %852 = vmatpush.msra.mxu0 0.0
        %853 = vmatpush.msra.mxu0 0.0
        %854 = vmatpush.msra.mxu0 0.0
        %855 = vmatpush.msra.mxu0 0.0
        %856 = vmatpush.msra.mxu0 0.0
        %857 = vmatpush.msra.mxu0 0.0
        %858 = vmatpush.msra.mxu0 0.0
        %859 = vmatpush.msra.mxu0 0.0
        %860 = vmatpush.msra.mxu0 0.0
        %861 = vmatpush.msra.mxu0 0.0
        %862 = vmatpush.msra.mxu0 %v705
        %863 = vmatpush.msra.mxu0 %v704
        %864 = vmatpush.msra.mxu0 %v703
        %865 = vmatpush.msra.mxu0 %v702
        %866 = vmatmul.f32.gmra.mxu0 %v708
        %v867 = vpop.f32.mrf.mxu0
        %v868 = vadd.f32 0.0, %v867
        %869 = vdwg.mxu0
        %v870 = vld [vmem:[#allocation2] sm:$0xff]
        %v871 = vld [vmem:[#allocation2 + $0x8] sm:$0xff]
        %v872 = vld [vmem:[#allocation2 + $0x10] sm:$0xff]
        %v873 = vld [vmem:[#allocation2 + $0x18] sm:$0xff]
        %v874 = vld [vmem:[#allocation2 + $0x20] sm:$0xff]
        %v875 = vld [vmem:[#allocation2 + $0x28] sm:$0xff]
        %v876 = vld [vmem:[#allocation2 + $0x30] sm:$0xff]
        %v877 = vld [vmem:[#allocation2 + $0x38] sm:$0xff]
        %vm878 = vcmask 31744
        %v880 = vsel %vm878, %v728, 0
        %v883 = vsel %vm878, %v870, 0
        %885 = vmatpush.xpose.msra.mxu0 0.0
        %886 = vmatpush.xpose.msra.mxu0 0.0
        %887 = vmatpush.xpose.msra.mxu0 0.0
        %888 = vmatpush.xpose.msra.mxu0 0.0
        %889 = vmatpush.xpose.msra.mxu0 0.0
        %890 = vmatpush.xpose.msra.mxu0 0.0
        %891 = vmatpush.xpose.msra.mxu0 0.0
        %892 = vmatpush.xpose.msra.mxu0 0.0
        %893 = vmatpush.xpose.msra.mxu0 0.0
        %894 = vmatpush.xpose.msra.mxu0 0.0
        %895 = vmatpush.xpose.msra.mxu0 0.0
        %896 = vmatpush.xpose.msra.mxu0 0.0
        %897 = vmatpush.xpose.msra.mxu0 0.0
        %898 = vmatpush.xpose.msra.mxu0 0.0
        %899 = vmatpush.xpose.msra.mxu0 0.0
        %900 = vmatpush.xpose.msra.mxu0 %v883
        %901 = vmatmul.f32.gmra.mxu0 %v880
        %v902 = vpop.f32.mrf.mxu0
        %v903 = vadd.f32 0.0, %v902
        %904 = vdwg.mxu0
        %v906 = vsel %vm878, %v748, 0
        %v909 = vsel %vm878, %v871, 0
        %911 = vmatpush.xpose.msra.mxu0 0.0
        %912 = vmatpush.xpose.msra.mxu0 0.0
        %913 = vmatpush.xpose.msra.mxu0 0.0
        %914 = vmatpush.xpose.msra.mxu0 0.0
        %915 = vmatpush.xpose.msra.mxu0 0.0
        %916 = vmatpush.xpose.msra.mxu0 0.0
        %917 = vmatpush.xpose.msra.mxu0 0.0
        %918 = vmatpush.xpose.msra.mxu0 0.0
        %919 = vmatpush.xpose.msra.mxu0 0.0
        %920 = vmatpush.xpose.msra.mxu0 0.0
        %921 = vmatpush.xpose.msra.mxu0 0.0
        %922 = vmatpush.xpose.msra.mxu0 0.0
        %923 = vmatpush.xpose.msra.mxu0 0.0
        %924 = vmatpush.xpose.msra.mxu0 0.0
        %925 = vmatpush.xpose.msra.mxu0 0.0
        %926 = vmatpush.xpose.msra.mxu0 %v909
        %927 = vmatmul.f32.gmra.mxu0 %v906
        %v928 = vpop.f32.mrf.mxu0
        %v929 = vadd.f32 0.0, %v928
        %930 = vdwg.mxu0
        %v932 = vsel %vm878, %v768, 0
        %v935 = vsel %vm878, %v872, 0
        %937 = vmatpush.xpose.msra.mxu0 0.0
        %938 = vmatpush.xpose.msra.mxu0 0.0
        %939 = vmatpush.xpose.msra.mxu0 0.0
        %940 = vmatpush.xpose.msra.mxu0 0.0
        %941 = vmatpush.xpose.msra.mxu0 0.0
        %942 = vmatpush.xpose.msra.mxu0 0.0
        %943 = vmatpush.xpose.msra.mxu0 0.0
        %944 = vmatpush.xpose.msra.mxu0 0.0
        %945 = vmatpush.xpose.msra.mxu0 0.0
        %946 = vmatpush.xpose.msra.mxu0 0.0
        %947 = vmatpush.xpose.msra.mxu0 0.0
        %948 = vmatpush.xpose.msra.mxu0 0.0
        %949 = vmatpush.xpose.msra.mxu0 0.0
        %950 = vmatpush.xpose.msra.mxu0 0.0
        %951 = vmatpush.xpose.msra.mxu0 0.0
        %952 = vmatpush.xpose.msra.mxu0 %v935
        %953 = vmatmul.f32.gmra.mxu0 %v932
        %v954 = vpop.f32.mrf.mxu0
        %v955 = vadd.f32 0.0, %v954
        %956 = vdwg.mxu0
        %v958 = vsel %vm878, %v788, 0
        %v961 = vsel %vm878, %v873, 0
        %963 = vmatpush.xpose.msra.mxu0 0.0
        %964 = vmatpush.xpose.msra.mxu0 0.0
        %965 = vmatpush.xpose.msra.mxu0 0.0
        %966 = vmatpush.xpose.msra.mxu0 0.0
        %967 = vmatpush.xpose.msra.mxu0 0.0
        %968 = vmatpush.xpose.msra.mxu0 0.0
        %969 = vmatpush.xpose.msra.mxu0 0.0
        %970 = vmatpush.xpose.msra.mxu0 0.0
        %971 = vmatpush.xpose.msra.mxu0 0.0
        %972 = vmatpush.xpose.msra.mxu0 0.0
        %973 = vmatpush.xpose.msra.mxu0 0.0
        %974 = vmatpush.xpose.msra.mxu0 0.0
        %975 = vmatpush.xpose.msra.mxu0 0.0
        %976 = vmatpush.xpose.msra.mxu0 0.0
        %977 = vmatpush.xpose.msra.mxu0 0.0
        %978 = vmatpush.xpose.msra.mxu0 %v961
        %979 = vmatmul.f32.gmra.mxu0 %v958
        %v980 = vpop.f32.mrf.mxu0
        %v981 = vadd.f32 0.0, %v980
        %982 = vdwg.mxu0
        %v984 = vsel %vm878, %v808, 0
        %v987 = vsel %vm878, %v874, 0
        %989 = vmatpush.xpose.msra.mxu0 0.0
        %990 = vmatpush.xpose.msra.mxu0 0.0
        %991 = vmatpush.xpose.msra.mxu0 0.0
        %992 = vmatpush.xpose.msra.mxu0 0.0
        %993 = vmatpush.xpose.msra.mxu0 0.0
        %994 = vmatpush.xpose.msra.mxu0 0.0
        %995 = vmatpush.xpose.msra.mxu0 0.0
        %996 = vmatpush.xpose.msra.mxu0 0.0
        %997 = vmatpush.xpose.msra.mxu0 0.0
        %998 = vmatpush.xpose.msra.mxu0 0.0
        %999 = vmatpush.xpose.msra.mxu0 0.0
        %1000 = vmatpush.xpose.msra.mxu0 0.0
        %1001 = vmatpush.xpose.msra.mxu0 0.0
        %1002 = vmatpush.xpose.msra.mxu0 0.0
        %1003 = vmatpush.xpose.msra.mxu0 0.0
        %1004 = vmatpush.xpose.msra.mxu0 %v987
        %1005 = vmatmul.f32.gmra.mxu0 %v984
        %v1006 = vpop.f32.mrf.mxu0
        %v1007 = vadd.f32 0.0, %v1006
        %1008 = vdwg.mxu0
        %v1010 = vsel %vm878, %v828, 0
        %v1013 = vsel %vm878, %v875, 0
        %1015 = vmatpush.xpose.msra.mxu0 0.0
        %1016 = vmatpush.xpose.msra.mxu0 0.0
        %1017 = vmatpush.xpose.msra.mxu0 0.0
        %1018 = vmatpush.xpose.msra.mxu0 0.0
        %1019 = vmatpush.xpose.msra.mxu0 0.0
        %1020 = vmatpush.xpose.msra.mxu0 0.0
        %1021 = vmatpush.xpose.msra.mxu0 0.0
        %1022 = vmatpush.xpose.msra.mxu0 0.0
        %1023 = vmatpush.xpose.msra.mxu0 0.0
        %1024 = vmatpush.xpose.msra.mxu0 0.0
        %1025 = vmatpush.xpose.msra.mxu0 0.0
        %1026 = vmatpush.xpose.msra.mxu0 0.0
        %1027 = vmatpush.xpose.msra.mxu0 0.0
        %1028 = vmatpush.xpose.msra.mxu0 0.0
        %1029 = vmatpush.xpose.msra.mxu0 0.0
        %1030 = vmatpush.xpose.msra.mxu0 %v1013
        %1031 = vmatmul.f32.gmra.mxu0 %v1010
        %v1032 = vpop.f32.mrf.mxu0
        %v1033 = vadd.f32 0.0, %v1032
        %1034 = vdwg.mxu0
        %v1036 = vsel %vm878, %v848, 0
        %v1039 = vsel %vm878, %v876, 0
        %1041 = vmatpush.xpose.msra.mxu0 0.0
        %1042 = vmatpush.xpose.msra.mxu0 0.0
        %1043 = vmatpush.xpose.msra.mxu0 0.0
        %1044 = vmatpush.xpose.msra.mxu0 0.0
        %1045 = vmatpush.xpose.msra.mxu0 0.0
        %1046 = vmatpush.xpose.msra.mxu0 0.0
        %1047 = vmatpush.xpose.msra.mxu0 0.0
        %1048 = vmatpush.xpose.msra.mxu0 0.0
        %1049 = vmatpush.xpose.msra.mxu0 0.0
        %1050 = vmatpush.xpose.msra.mxu0 0.0
        %1051 = vmatpush.xpose.msra.mxu0 0.0
        %1052 = vmatpush.xpose.msra.mxu0 0.0
        %1053 = vmatpush.xpose.msra.mxu0 0.0
        %1054 = vmatpush.xpose.msra.mxu0 0.0
        %1055 = vmatpush.xpose.msra.mxu0 0.0
        %1056 = vmatpush.xpose.msra.mxu0 %v1039
        %1057 = vmatmul.f32.gmra.mxu0 %v1036
        %v1058 = vpop.f32.mrf.mxu0
        %v1059 = vadd.f32 0.0, %v1058
        %1060 = vdwg.mxu0
        %v1062 = vsel %vm878, %v868, 0
        %v1065 = vsel %vm878, %v877, 0
        %1067 = vmatpush.xpose.msra.mxu0 0.0
        %1068 = vmatpush.xpose.msra.mxu0 0.0
        %1069 = vmatpush.xpose.msra.mxu0 0.0
        %1070 = vmatpush.xpose.msra.mxu0 0.0
        %1071 = vmatpush.xpose.msra.mxu0 0.0
        %1072 = vmatpush.xpose.msra.mxu0 0.0
        %1073 = vmatpush.xpose.msra.mxu0 0.0
        %1074 = vmatpush.xpose.msra.mxu0 0.0
        %1075 = vmatpush.xpose.msra.mxu0 0.0
        %1076 = vmatpush.xpose.msra.mxu0 0.0
        %1077 = vmatpush.xpose.msra.mxu0 0.0
        %1078 = vmatpush.xpose.msra.mxu0 0.0
        %1079 = vmatpush.xpose.msra.mxu0 0.0
        %1080 = vmatpush.xpose.msra.mxu0 0.0
        %1081 = vmatpush.xpose.msra.mxu0 0.0
        %1082 = vmatpush.xpose.msra.mxu0 %v1065
        %1083 = vmatmul.f32.gmra.mxu0 %v1062
        %v1084 = vpop.f32.mrf.mxu0
        %v1085 = vadd.f32 0.0, %v1084
        %1086 = vdwg.mxu0
        %vm1087 = vcmask 64512
        %v1088 = vsel %vm1087, %v903, -inf
        %1089 = vmax.xlane.f32.xlu0 %v1088
        %v1090 = vpop.xlane.xlu0 %1089
        %v1091 = vsel %vm1087, %v929, -inf
        %1092 = vmax.xlane.f32.xlu0 %v1091
        %v1093 = vpop.xlane.xlu0 %1092
        %v1094 = vsel %vm1087, %v955, -inf
        %1095 = vmax.xlane.f32.xlu0 %v1094
        %v1096 = vpop.xlane.xlu0 %1095
        %v1097 = vsel %vm1087, %v981, -inf
        %1098 = vmax.xlane.f32.xlu0 %v1097
        %v1099 = vpop.xlane.xlu0 %1098
        %v1100 = vsel %vm1087, %v1007, -inf
        %1101 = vmax.xlane.f32.xlu0 %v1100
        %v1102 = vpop.xlane.xlu0 %1101
        %v1103 = vsel %vm1087, %v1033, -inf
        %1104 = vmax.xlane.f32.xlu0 %v1103
        %v1105 = vpop.xlane.xlu0 %1104
        %v1106 = vsel %vm1087, %v1059, -inf
        %1107 = vmax.xlane.f32.xlu0 %v1106
        %v1108 = vpop.xlane.xlu0 %1107
        %v1109 = vsel %vm1087, %v1085, -inf
        %1110 = vmax.xlane.f32.xlu0 %v1109
        %v1111 = vpop.xlane.xlu0 %1110
        %v1112 = vsub.f32 %v903, %v1090
        %v1113 = vsub.f32 %v929, %v1093
        %v1114 = vsub.f32 %v955, %v1096
        %v1115 = vsub.f32 %v981, %v1099
        %v1116 = vsub.f32 %v1007, %v1102
        %v1117 = vsub.f32 %v1033, %v1105
        %v1118 = vsub.f32 %v1059, %v1108
        %v1119 = vsub.f32 %v1085, %v1111
        %v1120 = vmul.f32 %v1112, 1.442695
        %v1121 = vpow.pop %v1120
        %v1122 = vmul.f32 %v1113, 1.442695
        %v1123 = vpow.pop %v1122
        %v1124 = vmul.f32 %v1114, 1.442695
        %v1125 = vpow.pop %v1124
        %v1126 = vmul.f32 %v1115, 1.442695
        %v1127 = vpow.pop %v1126
        %v1128 = vmul.f32 %v1116, 1.442695
        %v1129 = vpow.pop %v1128
        %v1130 = vmul.f32 %v1117, 1.442695
        %v1131 = vpow.pop %v1130
        %v1132 = vmul.f32 %v1118, 1.442695
        %v1133 = vpow.pop %v1132
        %v1134 = vmul.f32 %v1119, 1.442695
        %v1135 = vpow.pop %v1134
        %v1136 = vsel %vm1087, %v1121, 0.0
        %1137 = vadd.xlane.f32.xlu0 %v1136
        %v1138 = vpop.xlane.xlu0 %1137
        %v1139 = vsel %vm1087, %v1123, 0.0
        %1140 = vadd.xlane.f32.xlu0 %v1139
        %v1141 = vpop.xlane.xlu0 %1140
        %v1142 = vsel %vm1087, %v1125, 0.0
        %1143 = vadd.xlane.f32.xlu0 %v1142
        %v1144 = vpop.xlane.xlu0 %1143
        %v1145 = vsel %vm1087, %v1127, 0.0
        %1146 = vadd.xlane.f32.xlu0 %v1145
        %v1147 = vpop.xlane.xlu0 %1146
        %v1148 = vsel %vm1087, %v1129, 0.0
        %1149 = vadd.xlane.f32.xlu0 %v1148
        %v1150 = vpop.xlane.xlu0 %1149
        %v1151 = vsel %vm1087, %v1131, 0.0
        %1152 = vadd.xlane.f32.xlu0 %v1151
        %v1153 = vpop.xlane.xlu0 %1152
        %v1154 = vsel %vm1087, %v1133, 0.0
        %1155 = vadd.xlane.f32.xlu0 %v1154
        %v1156 = vpop.xlane.xlu0 %1155
        %v1157 = vsel %vm1087, %v1135, 0.0
        %1158 = vadd.xlane.f32.xlu0 %v1157
        %v1159 = vpop.xlane.xlu0 %1158
        %v1160 = vld [vmem:[#allocation3] sm:$0xff]
        %v1161 = vld [vmem:[#allocation3 + $0x8] sm:$0xff]
        %v1162 = vld [vmem:[#allocation3 + $0x10] sm:$0xff]
        %v1163 = vld [vmem:[#allocation3 + $0x18] sm:$0xff]
        %v1164 = vld [vmem:[#allocation3 + $0x20] sm:$0xff]
        %v1165 = vld [vmem:[#allocation3 + $0x28] sm:$0xff]
        %v1166 = vld [vmem:[#allocation3 + $0x30] sm:$0xff]
        %v1167 = vld [vmem:[#allocation3 + $0x38] sm:$0xff]
        %v1169 = vsel %vm1087, %v1121, 0
        %1171 = vmatpush.msra.mxu0 0.0
        %1172 = vmatpush.msra.mxu0 0.0
        %1173 = vmatpush.msra.mxu0 0.0
        %1174 = vmatpush.msra.mxu0 0.0
        %1175 = vmatpush.msra.mxu0 0.0
        %1176 = vmatpush.msra.mxu0 0.0
        %1177 = vmatpush.msra.mxu0 0.0
        %1178 = vmatpush.msra.mxu0 0.0
        %1179 = vmatpush.msra.mxu0 0.0
        %1180 = vmatpush.msra.mxu0 0.0
        %1181 = vmatpush.msra.mxu0 0.0
        %1182 = vmatpush.msra.mxu0 0.0
        %1183 = vmatpush.msra.mxu0 0.0
        %1184 = vmatpush.msra.mxu0 0.0
        %1185 = vmatpush.msra.mxu0 0.0
        %1186 = vmatpush.msra.mxu0 %v1160
        %1187 = vmatmul.f32.gmra.mxu0 %v1169
        %v1188 = vpop.f32.mrf.mxu0
        %v1189 = vadd.f32 0.0, %v1188
        %1190 = vdwg.mxu0
        %v1192 = vsel %vm1087, %v1123, 0
        %1194 = vmatpush.msra.mxu0 0.0
        %1195 = vmatpush.msra.mxu0 0.0
        %1196 = vmatpush.msra.mxu0 0.0
        %1197 = vmatpush.msra.mxu0 0.0
        %1198 = vmatpush.msra.mxu0 0.0
        %1199 = vmatpush.msra.mxu0 0.0
        %1200 = vmatpush.msra.mxu0 0.0
        %1201 = vmatpush.msra.mxu0 0.0
        %1202 = vmatpush.msra.mxu0 0.0
        %1203 = vmatpush.msra.mxu0 0.0
        %1204 = vmatpush.msra.mxu0 0.0
        %1205 = vmatpush.msra.mxu0 0.0
        %1206 = vmatpush.msra.mxu0 0.0
        %1207 = vmatpush.msra.mxu0 0.0
        %1208 = vmatpush.msra.mxu0 0.0
        %1209 = vmatpush.msra.mxu0 %v1161
        %1210 = vmatmul.f32.gmra.mxu0 %v1192
        %v1211 = vpop.f32.mrf.mxu0
        %v1212 = vadd.f32 0.0, %v1211
        %1213 = vdwg.mxu0
        %v1215 = vsel %vm1087, %v1125, 0
        %1217 = vmatpush.msra.mxu0 0.0
        %1218 = vmatpush.msra.mxu0 0.0
        %1219 = vmatpush.msra.mxu0 0.0
        %1220 = vmatpush.msra.mxu0 0.0
        %1221 = vmatpush.msra.mxu0 0.0
        %1222 = vmatpush.msra.mxu0 0.0
        %1223 = vmatpush.msra.mxu0 0.0
        %1224 = vmatpush.msra.mxu0 0.0
        %1225 = vmatpush.msra.mxu0 0.0
        %1226 = vmatpush.msra.mxu0 0.0
        %1227 = vmatpush.msra.mxu0 0.0
        %1228 = vmatpush.msra.mxu0 0.0
        %1229 = vmatpush.msra.mxu0 0.0
        %1230 = vmatpush.msra.mxu0 0.0
        %1231 = vmatpush.msra.mxu0 0.0
        %1232 = vmatpush.msra.mxu0 %v1162
        %1233 = vmatmul.f32.gmra.mxu0 %v1215
        %v1234 = vpop.f32.mrf.mxu0
        %v1235 = vadd.f32 0.0, %v1234
        %1236 = vdwg.mxu0
        %v1238 = vsel %vm1087, %v1127, 0
        %1240 = vmatpush.msra.mxu0 0.0
        %1241 = vmatpush.msra.mxu0 0.0
        %1242 = vmatpush.msra.mxu0 0.0
        %1243 = vmatpush.msra.mxu0 0.0
        %1244 = vmatpush.msra.mxu0 0.0
        %1245 = vmatpush.msra.mxu0 0.0
        %1246 = vmatpush.msra.mxu0 0.0
        %1247 = vmatpush.msra.mxu0 0.0
        %1248 = vmatpush.msra.mxu0 0.0
        %1249 = vmatpush.msra.mxu0 0.0
        %1250 = vmatpush.msra.mxu0 0.0
        %1251 = vmatpush.msra.mxu0 0.0
        %1252 = vmatpush.msra.mxu0 0.0
        %1253 = vmatpush.msra.mxu0 0.0
        %1254 = vmatpush.msra.mxu0 0.0
        %1255 = vmatpush.msra.mxu0 %v1163
        %1256 = vmatmul.f32.gmra.mxu0 %v1238
        %v1257 = vpop.f32.mrf.mxu0
        %v1258 = vadd.f32 0.0, %v1257
        %1259 = vdwg.mxu0
        %v1261 = vsel %vm1087, %v1129, 0
        %1263 = vmatpush.msra.mxu0 0.0
        %1264 = vmatpush.msra.mxu0 0.0
        %1265 = vmatpush.msra.mxu0 0.0
        %1266 = vmatpush.msra.mxu0 0.0
        %1267 = vmatpush.msra.mxu0 0.0
        %1268 = vmatpush.msra.mxu0 0.0
        %1269 = vmatpush.msra.mxu0 0.0
        %1270 = vmatpush.msra.mxu0 0.0
        %1271 = vmatpush.msra.mxu0 0.0
        %1272 = vmatpush.msra.mxu0 0.0
        %1273 = vmatpush.msra.mxu0 0.0
        %1274 = vmatpush.msra.mxu0 0.0
        %1275 = vmatpush.msra.mxu0 0.0
        %1276 = vmatpush.msra.mxu0 0.0
        %1277 = vmatpush.msra.mxu0 0.0
        %1278 = vmatpush.msra.mxu0 %v1164
        %1279 = vmatmul.f32.gmra.mxu0 %v1261
        %v1280 = vpop.f32.mrf.mxu0
        %v1281 = vadd.f32 0.0, %v1280
        %1282 = vdwg.mxu0
        %v1284 = vsel %vm1087, %v1131, 0
        %1286 = vmatpush.msra.mxu0 0.0
        %1287 = vmatpush.msra.mxu0 0.0
        %1288 = vmatpush.msra.mxu0 0.0
        %1289 = vmatpush.msra.mxu0 0.0
        %1290 = vmatpush.msra.mxu0 0.0
        %1291 = vmatpush.msra.mxu0 0.0
        %1292 = vmatpush.msra.mxu0 0.0
        %1293 = vmatpush.msra.mxu0 0.0
        %1294 = vmatpush.msra.mxu0 0.0
        %1295 = vmatpush.msra.mxu0 0.0
        %1296 = vmatpush.msra.mxu0 0.0
        %1297 = vmatpush.msra.mxu0 0.0
        %1298 = vmatpush.msra.mxu0 0.0
        %1299 = vmatpush.msra.mxu0 0.0
        %1300 = vmatpush.msra.mxu0 0.0
        %1301 = vmatpush.msra.mxu0 %v1165
        %1302 = vmatmul.f32.gmra.mxu0 %v1284
        %v1303 = vpop.f32.mrf.mxu0
        %v1304 = vadd.f32 0.0, %v1303
        %1305 = vdwg.mxu0
        %v1307 = vsel %vm1087, %v1133, 0
        %1309 = vmatpush.msra.mxu0 0.0
        %1310 = vmatpush.msra.mxu0 0.0
        %1311 = vmatpush.msra.mxu0 0.0
        %1312 = vmatpush.msra.mxu0 0.0
        %1313 = vmatpush.msra.mxu0 0.0
        %1314 = vmatpush.msra.mxu0 0.0
        %1315 = vmatpush.msra.mxu0 0.0
        %1316 = vmatpush.msra.mxu0 0.0
        %1317 = vmatpush.msra.mxu0 0.0
        %1318 = vmatpush.msra.mxu0 0.0
        %1319 = vmatpush.msra.mxu0 0.0
        %1320 = vmatpush.msra.mxu0 0.0
        %1321 = vmatpush.msra.mxu0 0.0
        %1322 = vmatpush.msra.mxu0 0.0
        %1323 = vmatpush.msra.mxu0 0.0
        %1324 = vmatpush.msra.mxu0 %v1166
        %1325 = vmatmul.f32.gmra.mxu0 %v1307
        %v1326 = vpop.f32.mrf.mxu0
        %v1327 = vadd.f32 0.0, %v1326
        %1328 = vdwg.mxu0
        %v1330 = vsel %vm1087, %v1135, 0
        %1332 = vmatpush.msra.mxu0 0.0
        %1333 = vmatpush.msra.mxu0 0.0
        %1334 = vmatpush.msra.mxu0 0.0
        %1335 = vmatpush.msra.mxu0 0.0
        %1336 = vmatpush.msra.mxu0 0.0
        %1337 = vmatpush.msra.mxu0 0.0
        %1338 = vmatpush.msra.mxu0 0.0
        %1339 = vmatpush.msra.mxu0 0.0
        %1340 = vmatpush.msra.mxu0 0.0
        %1341 = vmatpush.msra.mxu0 0.0
        %1342 = vmatpush.msra.mxu0 0.0
        %1343 = vmatpush.msra.mxu0 0.0
        %1344 = vmatpush.msra.mxu0 0.0
        %1345 = vmatpush.msra.mxu0 0.0
        %1346 = vmatpush.msra.mxu0 0.0
        %1347 = vmatpush.msra.mxu0 %v1167
        %1348 = vmatmul.f32.gmra.mxu0 %v1330
        %v1349 = vpop.f32.mrf.mxu0
        %v1350 = vadd.f32 0.0, %v1349
        %1351 = vdwg.mxu0
        %v1352 = vrcp.pop %v1138
        %v1353 = vrcp.pop %v1141
        %v1354 = vrcp.pop %v1144
        %v1355 = vrcp.pop %v1147
        %v1356 = vrcp.pop %v1150
        %v1357 = vrcp.pop %v1153
        %v1358 = vrcp.pop %v1156
        %v1359 = vrcp.pop %v1159
        %v1360 = vmul.f32 %v1189, %v1352
        %v1361 = vmul.f32 %v1212, %v1353
        %v1362 = vmul.f32 %v1235, %v1354
        %v1363 = vmul.f32 %v1258, %v1355
        %v1364 = vmul.f32 %v1281, %v1356
        %v1365 = vmul.f32 %v1304, %v1357
        %v1366 = vmul.f32 %v1327, %v1358
        %v1367 = vmul.f32 %v1350, %v1359
        %v1368 = vld [vmem:[%s4] sm:$0xf]
        %v1369 = vld [vmem:[%s4 + $0x4] sm:$0xf]
        %v1370 = vld [vmem:[%s4 + $0x8] sm:$0xf]
        %v1371 = vld [vmem:[%s4 + $0xc] sm:$0xf]
        %v1372 = vld [vmem:[%s4 + $0x10] sm:$0xf]
        %v1373 = vld [vmem:[%s4 + $0x14] sm:$0xf]
        %v1374 = vld [vmem:[%s4 + $0x18] sm:$0xf]
        %v1375 = vld [vmem:[%s4 + $0x1c] sm:$0xf]
        %v1377 = vsel %vm878, %v1360, 0
        %vm1379 = vcmask 1043456
        %v1381 = vsel %vm1379, %v1368, 0
        %1383 = vmatpush.msra.mxu0 0.0
        %1384 = vmatpush.msra.mxu0 0.0
        %1385 = vmatpush.msra.mxu0 0.0
        %1386 = vmatpush.msra.mxu0 0.0
        %1387 = vmatpush.msra.mxu0 0.0
        %1388 = vmatpush.msra.mxu0 0.0
        %1389 = vmatpush.msra.mxu0 0.0
        %1390 = vmatpush.msra.mxu0 0.0
        %1391 = vmatpush.msra.mxu0 0.0
        %1392 = vmatpush.msra.mxu0 0.0
        %1393 = vmatpush.msra.mxu0 0.0
        %1394 = vmatpush.msra.mxu0 0.0
        %1395 = vmatpush.msra.mxu0 0.0
        %1396 = vmatpush.msra.mxu0 0.0
        %1397 = vmatpush.msra.mxu0 0.0
        %1398 = vmatpush.msra.mxu0 %v1381
        %1399 = vmatmul.f32.gmra.mxu0 %v1377
        %v1400 = vpop.f32.mrf.mxu0
        %v1401 = vadd.f32 0.0, %v1400
        %1402 = vdwg.mxu0
        %v1404 = vsel %vm878, %v1361, 0
        %v1407 = vsel %vm1379, %v1369, 0
        %1409 = vmatpush.msra.mxu0 0.0
        %1410 = vmatpush.msra.mxu0 0.0
        %1411 = vmatpush.msra.mxu0 0.0
        %1412 = vmatpush.msra.mxu0 0.0
        %1413 = vmatpush.msra.mxu0 0.0
        %1414 = vmatpush.msra.mxu0 0.0
        %1415 = vmatpush.msra.mxu0 0.0
        %1416 = vmatpush.msra.mxu0 0.0
        %1417 = vmatpush.msra.mxu0 0.0
        %1418 = vmatpush.msra.mxu0 0.0
        %1419 = vmatpush.msra.mxu0 0.0
        %1420 = vmatpush.msra.mxu0 0.0
        %1421 = vmatpush.msra.mxu0 0.0
        %1422 = vmatpush.msra.mxu0 0.0
        %1423 = vmatpush.msra.mxu0 0.0
        %1424 = vmatpush.msra.mxu0 %v1407
        %1425 = vmatmul.f32.gmra.mxu0 %v1404
        %v1426 = vpop.f32.mrf.mxu0
        %v1427 = vadd.f32 0.0, %v1426
        %1428 = vdwg.mxu0
        %v1430 = vsel %vm878, %v1362, 0
        %v1433 = vsel %vm1379, %v1370, 0
        %1435 = vmatpush.msra.mxu0 0.0
        %1436 = vmatpush.msra.mxu0 0.0
        %1437 = vmatpush.msra.mxu0 0.0
        %1438 = vmatpush.msra.mxu0 0.0
        %1439 = vmatpush.msra.mxu0 0.0
        %1440 = vmatpush.msra.mxu0 0.0
        %1441 = vmatpush.msra.mxu0 0.0
        %1442 = vmatpush.msra.mxu0 0.0
        %1443 = vmatpush.msra.mxu0 0.0
        %1444 = vmatpush.msra.mxu0 0.0
        %1445 = vmatpush.msra.mxu0 0.0
        %1446 = vmatpush.msra.mxu0 0.0
        %1447 = vmatpush.msra.mxu0 0.0
        %1448 = vmatpush.msra.mxu0 0.0
        %1449 = vmatpush.msra.mxu0 0.0
        %1450 = vmatpush.msra.mxu0 %v1433
        %1451 = vmatmul.f32.gmra.mxu0 %v1430
        %v1452 = vpop.f32.mrf.mxu0
        %v1453 = vadd.f32 0.0, %v1452
        %1454 = vdwg.mxu0
        %v1456 = vsel %vm878, %v1363, 0
        %v1459 = vsel %vm1379, %v1371, 0
        %1461 = vmatpush.msra.mxu0 0.0
        %1462 = vmatpush.msra.mxu0 0.0
        %1463 = vmatpush.msra.mxu0 0.0
        %1464 = vmatpush.msra.mxu0 0.0
        %1465 = vmatpush.msra.mxu0 0.0
        %1466 = vmatpush.msra.mxu0 0.0
        %1467 = vmatpush.msra.mxu0 0.0
        %1468 = vmatpush.msra.mxu0 0.0
        %1469 = vmatpush.msra.mxu0 0.0
        %1470 = vmatpush.msra.mxu0 0.0
        %1471 = vmatpush.msra.mxu0 0.0
        %1472 = vmatpush.msra.mxu0 0.0
        %1473 = vmatpush.msra.mxu0 0.0
        %1474 = vmatpush.msra.mxu0 0.0
        %1475 = vmatpush.msra.mxu0 0.0
        %1476 = vmatpush.msra.mxu0 %v1459
        %1477 = vmatmul.f32.gmra.mxu0 %v1456
        %v1478 = vpop.f32.mrf.mxu0
        %v1479 = vadd.f32 0.0, %v1478
        %1480 = vdwg.mxu0
        %v1482 = vsel %vm878, %v1364, 0
        %v1485 = vsel %vm1379, %v1372, 0
        %1487 = vmatpush.msra.mxu0 0.0
        %1488 = vmatpush.msra.mxu0 0.0
        %1489 = vmatpush.msra.mxu0 0.0
        %1490 = vmatpush.msra.mxu0 0.0
        %1491 = vmatpush.msra.mxu0 0.0
        %1492 = vmatpush.msra.mxu0 0.0
        %1493 = vmatpush.msra.mxu0 0.0
        %1494 = vmatpush.msra.mxu0 0.0
        %1495 = vmatpush.msra.mxu0 0.0
        %1496 = vmatpush.msra.mxu0 0.0
        %1497 = vmatpush.msra.mxu0 0.0
        %1498 = vmatpush.msra.mxu0 0.0
        %1499 = vmatpush.msra.mxu0 0.0
        %1500 = vmatpush.msra.mxu0 0.0
        %1501 = vmatpush.msra.mxu0 0.0
        %1502 = vmatpush.msra.mxu0 %v1485
        %1503 = vmatmul.f32.gmra.mxu0 %v1482
        %v1504 = vpop.f32.mrf.mxu0
        %v1505 = vadd.f32 0.0, %v1504
        %1506 = vdwg.mxu0
        %v1508 = vsel %vm878, %v1365, 0
        %v1511 = vsel %vm1379, %v1373, 0
        %1513 = vmatpush.msra.mxu0 0.0
        %1514 = vmatpush.msra.mxu0 0.0
        %1515 = vmatpush.msra.mxu0 0.0
        %1516 = vmatpush.msra.mxu0 0.0
        %1517 = vmatpush.msra.mxu0 0.0
        %1518 = vmatpush.msra.mxu0 0.0
        %1519 = vmatpush.msra.mxu0 0.0
        %1520 = vmatpush.msra.mxu0 0.0
        %1521 = vmatpush.msra.mxu0 0.0
        %1522 = vmatpush.msra.mxu0 0.0
        %1523 = vmatpush.msra.mxu0 0.0
        %1524 = vmatpush.msra.mxu0 0.0
        %1525 = vmatpush.msra.mxu0 0.0
        %1526 = vmatpush.msra.mxu0 0.0
        %1527 = vmatpush.msra.mxu0 0.0
        %1528 = vmatpush.msra.mxu0 %v1511
        %1529 = vmatmul.f32.gmra.mxu0 %v1508
        %v1530 = vpop.f32.mrf.mxu0
        %v1531 = vadd.f32 0.0, %v1530
        %1532 = vdwg.mxu0
        %v1534 = vsel %vm878, %v1366, 0
        %v1537 = vsel %vm1379, %v1374, 0
        %1539 = vmatpush.msra.mxu0 0.0
        %1540 = vmatpush.msra.mxu0 0.0
        %1541 = vmatpush.msra.mxu0 0.0
        %1542 = vmatpush.msra.mxu0 0.0
        %1543 = vmatpush.msra.mxu0 0.0
        %1544 = vmatpush.msra.mxu0 0.0
        %1545 = vmatpush.msra.mxu0 0.0
        %1546 = vmatpush.msra.mxu0 0.0
        %1547 = vmatpush.msra.mxu0 0.0
        %1548 = vmatpush.msra.mxu0 0.0
        %1549 = vmatpush.msra.mxu0 0.0
        %1550 = vmatpush.msra.mxu0 0.0
        %1551 = vmatpush.msra.mxu0 0.0
        %1552 = vmatpush.msra.mxu0 0.0
        %1553 = vmatpush.msra.mxu0 0.0
        %1554 = vmatpush.msra.mxu0 %v1537
        %1555 = vmatmul.f32.gmra.mxu0 %v1534
        %v1556 = vpop.f32.mrf.mxu0
        %v1557 = vadd.f32 0.0, %v1556
        %1558 = vdwg.mxu0
        %v1560 = vsel %vm878, %v1367, 0
        %v1563 = vsel %vm1379, %v1375, 0
        %1565 = vmatpush.msra.mxu0 0.0
        %1566 = vmatpush.msra.mxu0 0.0
        %1567 = vmatpush.msra.mxu0 0.0
        %1568 = vmatpush.msra.mxu0 0.0
        %1569 = vmatpush.msra.mxu0 0.0
        %1570 = vmatpush.msra.mxu0 0.0
        %1571 = vmatpush.msra.mxu0 0.0
        %1572 = vmatpush.msra.mxu0 0.0
        %1573 = vmatpush.msra.mxu0 0.0
        %1574 = vmatpush.msra.mxu0 0.0
        %1575 = vmatpush.msra.mxu0 0.0
        %1576 = vmatpush.msra.mxu0 0.0
        %1577 = vmatpush.msra.mxu0 0.0
        %1578 = vmatpush.msra.mxu0 0.0
        %1579 = vmatpush.msra.mxu0 0.0
        %1580 = vmatpush.msra.mxu0 %v1563
        %1581 = vmatmul.f32.gmra.mxu0 %v1560
        %v1582 = vpop.f32.mrf.mxu0
        %v1583 = vadd.f32 0.0, %v1582
        %1584 = vdwg.mxu0
        %v1585 = vsel %vm706, %v1401, 0.0
        %v1586 = vsel %vm706, %v1427, 0.0
        %v1587 = vadd.f32 %v1585, %v1586
        %v1588 = vsel %vm706, %v1453, 0.0
        %v1589 = vadd.f32 %v1587, %v1588
        %v1590 = vsel %vm706, %v1479, 0.0
        %v1591 = vadd.f32 %v1589, %v1590
        %v1592 = vsel %vm706, %v1505, 0.0
        %v1593 = vadd.f32 %v1591, %v1592
        %v1594 = vsel %vm706, %v1531, 0.0
        %v1595 = vadd.f32 %v1593, %v1594
        %v1596 = vsel %vm706, %v1557, 0.0
        %v1597 = vadd.f32 %v1595, %v1596
        %v1598 = vsel %vm706, %v1583, 0.0
        %v1599 = vadd.f32 %v1597, %v1598
        %v1600 = vld [vmem:[%s5] sm:$0x1]
        %v1602 = vperm.slane %v1600, 0
        %v1604 = vadd.f32 %v1599, %v1602
        %1605 = vst.msk [vmem:[%s256] sm:$0xff] %vm706, %v1604
        %s1606 = sand.u32 %s173, 1
        %s1607 = scalar_lea.sflag [#allocation5], %s1606
        %s1608 = sand.u32 %s173, 1
        %s1609 = smul.addr %s1608, 8
        %s1610 = scalar_lea.vmem [#allocation4], %s1609
        // Predicated region
        $region49: #{tpu_custom_call.1} parent=43 // pred_check
          %p1611 = pneg %p183
        $region50: #{tpu_custom_call.1} parent=43 // pred_check_branch
          %1613 = sbr.rel (%p1611) target = $region52
        $region51: #{tpu_custom_call.1} parent=43 // pred_region
          %1615 = vsyncadd %s1607, 0
          %s1616 = sadd.s32 %s25, %s24
          %s1617 = smul.addr %s1616, 8
          %s1618 = scalar_lea.hbm %s6, %s1617
          %s1620 = sshll.u32 %s1610, 4
          %s1621 = int_to_ptr.vmem [resolvable:$true] %s1620
          %s1622 = sshll.u32 %s1618, 4
          %s1623 = int_to_ptr.hbm [resolvable:$true] %s1622
          %1625 = dma.vmem_to_hbm [thread:$0]  %s1621, 128, %s1623, %s1607
        $region52: #{tpu_custom_call.1} parent=43 // pred_fallthru
          _
      $region44: #{tpu_custom_call.1} parent=5 // pred_fallthru
        _
      %p1626 = scmp.le.s32.totalorder 2, %s15
      // Predicated region
      $region53: #{tpu_custom_call.1} parent=5 // pred_check
        %p1627 = pneg %p1626
      $region54: #{tpu_custom_call.1} parent=5 // pred_check_branch
        %1629 = sbr.rel (%p1627) target = $region56
      $region55: #{tpu_custom_call.1} parent=5 // pred_region
        %s1630 = ssub.s32 %s15, 2
        // Predicated region
        $region57: #{tpu_custom_call.1} parent=55 // pred_check
          %p1631 = pneg %p189
        $region58: #{tpu_custom_call.1} parent=55 // pred_check_branch
          %1633 = sbr.rel (%p1631) target = $region60
        $region59: #{tpu_custom_call.1} parent=55 // pred_region
          %s1634 = sand.u32 %s174, 1
          %s1635 = scalar_lea.sflag [#allocation5], %s1634
          %s1636 = sand.u32 %s174, 1
          %s1637 = smul.addr %s1636, 8
          %s1638 = scalar_lea.vmem [#allocation4], %s1637
          %1640 = dma.done %s1635, 128
        $region60: #{tpu_custom_call.1} parent=55 // pred_fallthru
          _
      $region56: #{tpu_custom_call.1} parent=5 // pred_fallthru
        _
    $region6: #{tpu_custom_call.1} parent=1 // loop_footer
      %s19 = sadd.s32 1, %s15
    $region7: #{tpu_custom_call.1} parent=1 // loop_footer_branch
      %14 = sbr.rel target = $region3
    $region8: #{tpu_custom_call.1} parent=1 // loop_exit
      _
    %1641 = vsyncpa [#allocation5], 1
    %s1642 = scalar_lea.sflag [#allocation5], 1
    %1643 = vsyncpa %s1642, 1

</llo_original>
